<compile_context>
chip_gen: v6e
topology: v6e:2x2x1
jax: 0.10.0
libtpu: 0.0.40
codegen_flags: <defaults>
</compile_context>

<pallas_src>
import functools

import jax
import jax.numpy as jnp
from jax.experimental import pallas as pl
from jax.experimental.pallas import tpu as pltpu

DW_KERNEL = 7          # depthwise conv kernel size along L (zero padding 3)
DW_HALF = DW_KERNEL // 2
LANE = 128             # TPU lane width; packed channel segment width


def _round_up(x, m):
    return ((x + m - 1) // m) * m


# ---------------------------------------------------------------------------
# Shared math (used by the Pallas kernel AND the matched-precision reference)
# ---------------------------------------------------------------------------
def _boundary_masks(rows, seq_len):
    """One (rows, 1) bool mask per depthwise tap offset: the shifted source row
    must stay inside its own length-L sequence (rows are B*L flattened,
    sequences contiguous and tile-aligned)."""
    pos = jax.lax.broadcasted_iota(jnp.int32, (rows, 1), 0) % seq_len
    masks = []
    for k in range(DW_KERNEL):
        off = k - DW_HALF
        masks.append(None if off == 0 else ((pos >= -off) & (pos < seq_len - off)))
    return masks


def _gnconv_block(h, masks, w_in, b_in, w_dw, b_dw, w_pw, b_pw, w_out, b_out,
                  *, d0p, kout, roll_fn):
    """One gnconv (order-2) block + ReLU in the packed 128-lane layout.

    h      : (rows, HW) activations (bf16/f32), zero beyond the real channels.
    fused  : (rows, 256) = [ pwa-segment (lanes 0:d0) | abc-segment
             (a at lanes 0:d0, b at lanes d0:d0+cout) ].
    w_pw's output columns are pre-offset to lanes [d0 : d0+cout] so the
    second gate is a plain elementwise product with dw.  BN is folded into
    the NEXT block's w_in at param-prep time.
    """
    rows = h.shape[0]
    seg = w_dw.shape[-1]

    # 1x1 proj_in on the MXU (bf16 operands, f32 accumulation).
    fused = jnp.dot(h.astype(jnp.bfloat16), w_in,
                    preferred_element_type=jnp.float32) + b_in
    pwa = fused[:, :seg]
    abc = fused[:, seg:]

    # Depthwise (1,7) conv along the sequence dim: cyclic sublane rolls (XLU)
    # masked back to zero padding at sequence boundaries.
    dw = abc * w_dw[DW_HALF:DW_HALF + 1, :] + b_dw
    for k in range(DW_KERNEL):
        off = k - DW_HALF
        if off == 0:
            continue
        shifted = roll_fn(abc, (-off) % rows)       # shifted[i] == abc[i + off]
        dw = dw + jnp.where(masks[k], shifted, 0.0) * w_dw[k:k + 1, :]

    # Recursive gating + 1x1 pointwise conv + 1x1 proj_out (MXU).
    y = pwa * dw                                    # nonzero only at lanes [0:d0]
    y = jnp.dot(y[:, :d0p].astype(jnp.bfloat16), w_pw,
                preferred_element_type=jnp.float32) + b_pw   # lands at [d0:d0+cout]
    y = y * dw                                      # == y * dw1 (lane-aligned)
    y = jnp.dot(y[:, :kout].astype(jnp.bfloat16), w_out,
                preferred_element_type=jnp.float32) + b_out  # (rows, HW)
    return jnp.maximum(y, 0.0).astype(jnp.bfloat16)          # ReLU, bf16 carry


# ---------------------------------------------------------------------------
# Fused Pallas kernel: embedding -> block1 -> block2 -> block3 -> BN3
# ---------------------------------------------------------------------------
def _fused_kernel(tok_ref, emb_ref, w_in_ref, b_in_ref, w_dw_ref, b_dw_ref,
                  w_pw_ref, b_pw_ref, w_out_ref, b_out_ref,
                  bn_scale_ref, bn_shift_ref, o_ref, *, seq_len, d0p, kout):
    rows = tok_ref.shape[0]
    vocab = emb_ref.shape[0]

    # Boundary masks hoisted out of the block loop (computed once).
    masks = _boundary_masks(rows, seq_len)

    # Embedding gather as a one-hot bf16 MXU matmul (padding_idx row is zero).
    tok = tok_ref[...]                                        # (rows, 1) int32
    vocab_iota = jax.lax.broadcasted_iota(jnp.int32, (rows, vocab), 1)
    onehot = jnp.where(tok == vocab_iota, 1.0, 0.0).astype(jnp.bfloat16)
    h = jnp.dot(onehot, emb_ref[...], preferred_element_type=jnp.float32)
    h = h.astype(jnp.bfloat16)                                # (rows, HW)

    roll_fn = lambda a, s: pltpu.roll(a, shift=s, axis=0)
    for blk in range(w_in_ref.shape[0]):                      # 3 fused blocks
        h = _gnconv_block(
            h, masks,
            w_in_ref[blk], b_in_ref[blk], w_dw_ref[blk], b_dw_ref[blk],
            w_pw_ref[blk], b_pw_ref[blk], w_out_ref[blk], b_out_ref[blk],
            d0p=d0p, kout=kout, roll_fn=roll_fn)

    # Only the last block's BatchNorm remains in-kernel (BN1/BN2 folded).
    o_ref[...] = h.astype(jnp.float32) * bn_scale_ref[...] + bn_shift_ref[...]


# ---------------------------------------------------------------------------
# Parameter init (deterministic, synthetic) — unpadded "logical" params
# ---------------------------------------------------------------------------
def init_gated_block_params(key, cin, cout, scale=0.1):
    assert cout % 2 == 0
    d0 = cout // 2
    dsum = d0 + cout
    ks = jax.random.split(key, 9)
    p = {
        "w_in":  jax.random.normal(ks[0], (cin, d0 + dsum), jnp.float32) * scale,
        "b_in":  jax.random.normal(ks[1], (1, d0 + dsum), jnp.float32) * scale,
        "w_dw":  jax.random.normal(ks[2], (DW_KERNEL, dsum), jnp.float32) * scale,
        "b_dw":  jax.random.normal(ks[3], (1, dsum), jnp.float32) * scale,
        "w_pw":  jax.random.normal(ks[4], (d0, cout), jnp.float32) * scale,
        "b_pw":  jax.random.normal(ks[5], (1, cout), jnp.float32) * scale,
        "w_out": jax.random.normal(ks[6], (cout, cout), jnp.float32) * scale,
        "b_out": jax.random.normal(ks[7], (1, cout), jnp.float32) * scale,
    }
    # BatchNorm1d inference mode -> per-channel affine.
    gamma = 1.0 + 0.1 * jax.random.normal(ks[8], (cout,), jnp.float32)
    beta = jnp.zeros((cout,), jnp.float32)
    running_mean = jnp.zeros((cout,), jnp.float32)
    running_var = jnp.ones((cout,), jnp.float32)
    eps = 1e-5
    bn_scale = gamma / jnp.sqrt(running_var + eps)
    bn_shift = beta - running_mean * bn_scale
    p["bn_scale"] = bn_scale.reshape(1, cout)
    p["bn_shift"] = bn_shift.reshape(1, cout)
    return p


def init_protein_module_params(key, embedding_dim, num_filters):
    in_ch = [embedding_dim] + num_filters
    k_emb, k1, k2, k3 = jax.random.split(key, 4)
    emb = jax.random.normal(k_emb, (26, embedding_dim), jnp.float32)
    emb = emb.at[0].set(0.0)  # padding_idx=0
    return {
        "embedding": emb,
        "block1": init_gated_block_params(k1, in_ch[0], in_ch[1]),
        "block2": init_gated_block_params(k2, in_ch[1], in_ch[2]),
        "block3": init_gated_block_params(k3, in_ch[2], in_ch[3]),
    }


# ---------------------------------------------------------------------------
# Param preparation: fold BN into the next proj_in, pack into lane segments,
# pad K dims only to the real counts (rounded to 16), cast MXU operands bf16.
# ---------------------------------------------------------------------------
def prepare_fused_params(params):
    blocks = [params["block1"], params["block2"], params["block3"]]

    # Fold block i's BN (inference affine) into block i+1's 1x1 proj_in.
    folded = []
    for i, p in enumerate(blocks):
        q = dict(p)
        if i > 0:
            prev = blocks[i - 1]
            scale = prev["bn_scale"].reshape(-1)
            shift = prev["bn_shift"].reshape(-1)
            q["w_in"] = scale[:, None] * p["w_in"]
            q["b_in"] = p["b_in"] + (shift @ p["w_in"]).reshape(1, -1)
        folded.append(q)

    cins = [q["w_in"].shape[0] for q in folded]
    d0s = [q["w_pw"].shape[0] for q in folded]
    couts = [q["w_out"].shape[1] for q in folded]
    E = params["embedding"].shape[1]
    SEG = LANE
    HW = _round_up(max(cins + couts + [E]), 16)        # activation width
    D0P = _round_up(max(d0s), 16)                      # w_pw K dim
    KOUT = _round_up(max(d + c for d, c in zip(d0s, couts)), 16)  # w_out K dim
    assert max(d + c for d, c in zip(d0s, couts)) <= SEG, "packing needs d0+cout<=128"

    def pad_block(q):
        cin = q["w_in"].shape[0]
        d0 = q["w_pw"].shape[0]
        cout = q["w_out"].shape[1]
        # proj_in -> [pwa segment | packed (a,b) segment]
        w_in = jnp.zeros((HW, 2 * SEG), jnp.float32)
        w_in = w_in.at[:cin, 0:d0].set(q["w_in"][:, :d0])
        w_in = w_in.at[:cin, SEG:SEG + d0].set(q["w_in"][:, d0:2 * d0])
        w_in = w_in.at[:cin, SEG + d0:SEG + d0 + cout].set(q["w_in"][:, 2 * d0:])
        b_in = jnp.zeros((1, 2 * SEG), jnp.float32)
        b_in = b_in.at[:, 0:d0].set(q["b_in"][:, :d0])
        b_in = b_in.at[:, SEG:SEG + d0].set(q["b_in"][:, d0:2 * d0])
        b_in = b_in.at[:, SEG + d0:SEG + d0 + cout].set(q["b_in"][:, 2 * d0:])
        # depthwise taps on the packed (a,b) segment
        w_dw = jnp.zeros((DW_KERNEL, SEG), jnp.float32)
        w_dw = w_dw.at[:, 0:d0].set(q["w_dw"][:, :d0])
        w_dw = w_dw.at[:, d0:d0 + cout].set(q["w_dw"][:, d0:])
        b_dw = jnp.zeros((1, SEG), jnp.float32)
        b_dw = b_dw.at[:, 0:d0].set(q["b_dw"][:, :d0])
        b_dw = b_dw.at[:, d0:d0 + cout].set(q["b_dw"][:, d0:])
        # pointwise conv: output columns offset to [d0 : d0+cout] so the
        # second gate aligns with dw1 without any lane shuffle.
        w_pw = jnp.zeros((D0P, SEG), jnp.float32).at[:d0, d0:d0 + cout].set(q["w_pw"])
        b_pw = jnp.zeros((1, SEG), jnp.float32).at[:, d0:d0 + cout].set(q["b_pw"])
        # proj_out: input rows offset to match, output at lanes [0:cout].
        w_out = jnp.zeros((KOUT, HW), jnp.float32).at[d0:d0 + cout, :cout].set(q["w_out"])
        b_out = jnp.zeros((1, HW), jnp.float32).at[:, :cout].set(q["b_out"])
        return dict(w_in=w_in, b_in=b_in, w_dw=w_dw, b_dw=b_dw,
                    w_pw=w_pw, b_pw=b_pw, w_out=w_out, b_out=b_out)

    padded = [pad_block(q) for q in folded]
    prep = {name: jnp.stack([p[name] for p in padded], axis=0)
            for name in ("w_in", "b_in", "w_dw", "b_dw",
                         "w_pw", "b_pw", "w_out", "b_out")}
    for name in ("w_in", "w_pw", "w_out"):            # MXU operands in bf16
        prep[name] = prep[name].astype(jnp.bfloat16)

    last = blocks[-1]
    cout3 = couts[-1]
    prep["bn_scale"] = jnp.ones((1, HW), jnp.float32).at[:, :cout3].set(
        last["bn_scale"].reshape(1, -1))
    prep["bn_shift"] = jnp.zeros((1, HW), jnp.float32).at[:, :cout3].set(
        last["bn_shift"].reshape(1, -1))

    vocab_p = _round_up(params["embedding"].shape[0], 16)     # 26 -> 32
    emb = jnp.zeros((vocab_p, HW), jnp.float32).at[:26, :E].set(params["embedding"])
    prep["emb"] = emb.astype(jnp.bfloat16)

    prep["HW"], prep["D0P"], prep["KOUT"], prep["COUT"] = HW, D0P, KOUT, cout3
    return prep


# ---------------------------------------------------------------------------
# Forward passes
# ---------------------------------------------------------------------------
def protein_forward_pallas(tokens, prep, *, rows_per_tile=512):
    B, L = tokens.shape
    HW, D0P, KOUT, C = prep["HW"], prep["D0P"], prep["KOUT"], prep["COUT"]

    # Tile the flattened B*L row dim over WHOLE sequences: the depthwise conv
    # never crosses a sequence boundary, so no halo is needed and the per-tile
    # `pos % L` boundary masks stay valid.
    n_seq = max(1, min(B, max(1, rows_per_tile // L)))
    if (n_seq * L) % 8 != 0:          # keep blocked second-minor dim 8-aligned
        n_seq = B                     # fall back to a single full-array tile
    grid_m = -(-B // n_seq)           # ceil
    b_pad = grid_m * n_seq
    rows_tile = n_seq * L
    rows_total = b_pad * L

    tok = tokens.reshape(B * L, 1).astype(jnp.int32)
    if b_pad != B:                    # pad with token 0 (= padding_idx, zero emb)
        tok = jnp.concatenate(
            [tok, jnp.zeros(((b_pad - B) * L, 1), jnp.int32)], axis=0)

    kernel = functools.partial(_fused_kernel, seq_len=L, d0p=D0P, kout=KOUT)

    def const_spec(a):                # whole-array block, constant index map
        zeros = (0,) * a.ndim
        return pl.BlockSpec(a.shape, lambda i, _z=zeros: _z)

    weight_args = [prep["emb"], prep["w_in"], prep["b_in"], prep["w_dw"],
                   prep["b_dw"], prep["w_pw"], prep["b_pw"], prep["w_out"],
                   prep["b_out"], prep["bn_scale"], prep["bn_shift"]]

    out = pl.pallas_call(
        kernel,
        out_shape=jax.ShapeDtypeStruct((rows_total, HW), jnp.float32),
        grid_spec=pltpu.PrefetchScalarGridSpec(
            num_scalar_prefetch=0,
            grid=(grid_m,),
            in_specs=[pl.BlockSpec((rows_tile, 1), lambda i: (i, 0))]
                     + [const_spec(a) for a in weight_args],
            out_specs=pl.BlockSpec((rows_tile, HW), lambda i: (i, 0)),
        ),
        compiler_params=pltpu.CompilerParams(
            dimension_semantics=("parallel",),        # v7x: shard tiles on 2 TCs
            vmem_limit_bytes=32 * 1024 * 1024),
    )(tok, *weight_args)

    v = out[:B * L, :C].reshape(B, L, C)
    # Reproduce PyTorch's raw view(B, L, -1) of the channels-first tensor.
    return jnp.transpose(v, (0, 2, 1)).reshape(B, L, C)


def protein_forward_matched(tokens, prep):
    """Plain-JAX twin of the fused kernel (same packed/folded/bf16 math)."""
    B, L = tokens.shape
    M = B * L
    C = prep["COUT"]
    tok = tokens.reshape(M).astype(jnp.int32)
    h = prep["emb"][tok]                               # bf16, same as one-hot matmul
    masks = _boundary_masks(M, L)
    roll_fn = lambda a, s: jnp.roll(a, s, axis=0)
    for blk in range(prep["w_in"].shape[0]):
        h = _gnconv_block(
            h, masks,
            prep["w_in"][blk], prep["b_in"][blk], prep["w_dw"][blk],
            prep["b_dw"][blk], prep["w_pw"][blk], prep["b_pw"][blk],
            prep["w_out"][blk], prep["b_out"][blk],
            d0p=prep["D0P"], kout=prep["KOUT"], roll_fn=roll_fn)
    out = h.astype(jnp.float32) * prep["bn_scale"] + prep["bn_shift"]
    v = out[:, :C].reshape(B, L, C)
    return jnp.transpose(v, (0, 2, 1)).reshape(B, L, C)


def gated_block_ref(x_blc, p):
    """Pure f32, unfused, unpadded reference for one block (+ReLU+BN)."""
    L = x_blc.shape[1]
    d0 = p["w_pw"].shape[0]
    fused = x_blc @ p["w_in"] + p["b_in"]
    pwa, abc = fused[..., :d0], fused[..., d0:]
    abc_pad = jnp.pad(abc, ((0, 0), (DW_HALF, DW_HALF), (0, 0)))
    dw = jnp.zeros_like(abc) + p["b_dw"][0]
    for k in range(DW_KERNEL):
        dw = dw + abc_pad[:, k:k + L, :] * p["w_dw"][k]
    dw0, dw1 = dw[..., :d0], dw[..., d0:]
    y = pwa * dw0
    y = (y @ p["w_pw"] + p["b_pw"]) * dw1
    y = y @ p["w_out"] + p["b_out"]
    y = jnp.maximum(y, 0.0)
    return y * p["bn_scale"] + p["bn_shift"]


def protein_forward_ref(tokens, params):
    v = params["embedding"][tokens]
    v = gated_block_ref(v, params["block1"])
    v = gated_block_ref(v, params["block2"])
    v = gated_block_ref(v, params["block3"])
    B, L, C = v.shape
    return jnp.transpose(v, (0, 2, 1)).reshape(B, L, C)


if __name__ == "__main__":
    B, L = 2, 16
    embedding_dim = 32
    num_filters = [32, 64, 64]

    key = jax.random.PRNGKey(0)
    k_tok, k_par = jax.random.split(key)
    tokens = jax.random.randint(k_tok, (B, L), 0, 26, dtype=jnp.int32)
    params = init_protein_module_params(k_par, embedding_dim, num_filters)
    prep = prepare_fused_params(params)

    out = jax.block_until_ready(protein_forward_pallas(tokens, prep))
    matched = jax.block_until_ready(protein_forward_matched(tokens, prep))
    ref_f32 = jax.block_until_ready(protein_forward_ref(tokens, params))

    assert out.shape == (B, L, num_filters[-1]), out.shape

    # Strict check vs the matched-precision (same packed/folded/bf16) reference.
    denom_m = float(jnp.max(jnp.abs(matched))) + 1e-6
    diff_m = float(jnp.max(jnp.abs(out - matched)))
    assert diff_m <= 2e-3 * denom_m + 1e-5, ("mismatch vs matched ref", diff_m, denom_m)

    # Loose check vs the pure-f32 unpadded reference (bf16 weights/activations).
    denom_f = float(jnp.max(jnp.abs(ref_f32))) + 1e-6
    diff_f = float(jnp.max(jnp.abs(out - ref_f32)))
    assert diff_f <= 8e-2 * denom_f + 1e-3, ("mismatch vs f32 ref", diff_f, denom_f)

    print("KERNEL_OK")
</pallas_src>

<mosaic_0001>
module attributes {stable_mosaic.version = 11 : i64} {
  func.func @_fused_kernel(%arg0: i32, %arg1: memref<32x1xi32, #tpu.memory_space<vmem>>, %arg2: memref<32x64xbf16, #tpu.memory_space<vmem>>, %arg3: memref<3x64x256xbf16, #tpu.memory_space<vmem>>, %arg4: memref<3x1x256xf32, #tpu.memory_space<vmem>>, %arg5: memref<3x7x128xf32, #tpu.memory_space<vmem>>, %arg6: memref<3x1x128xf32, #tpu.memory_space<vmem>>, %arg7: memref<3x32x128xbf16, #tpu.memory_space<vmem>>, %arg8: memref<3x1x128xf32, #tpu.memory_space<vmem>>, %arg9: memref<3x96x64xbf16, #tpu.memory_space<vmem>>, %arg10: memref<3x1x64xf32, #tpu.memory_space<vmem>>, %arg11: memref<1x64xf32, #tpu.memory_space<vmem>>, %arg12: memref<1x64xf32, #tpu.memory_space<vmem>>, %arg13: memref<32x64xf32, #tpu.memory_space<vmem>>) attributes {dimension_semantics = [#tpu.dimension_semantics<parallel>], iteration_bounds = array<i64: 1>, scalar_prefetch = 0 : i64, scratch_operands = 0 : i64, tpu.core_type = #tpu.core_type<tc>, window_params = [{transform_indices = @transform_0, window_bounds = array<i64: 32, 1>}, {pipeline_mode = #tpu.pipeline_mode<synchronous>, transform_indices = @transform_1, window_bounds = array<i64: 32, 64>}, {pipeline_mode = #tpu.pipeline_mode<synchronous>, transform_indices = @transform_2, window_bounds = array<i64: 3, 64, 256>}, {pipeline_mode = #tpu.pipeline_mode<synchronous>, transform_indices = @transform_3, window_bounds = array<i64: 3, 1, 256>}, {pipeline_mode = #tpu.pipeline_mode<synchronous>, transform_indices = @transform_4, window_bounds = array<i64: 3, 7, 128>}, {pipeline_mode = #tpu.pipeline_mode<synchronous>, transform_indices = @transform_5, window_bounds = array<i64: 3, 1, 128>}, {pipeline_mode = #tpu.pipeline_mode<synchronous>, transform_indices = @transform_6, window_bounds = array<i64: 3, 32, 128>}, {pipeline_mode = #tpu.pipeline_mode<synchronous>, transform_indices = @transform_7, window_bounds = array<i64: 3, 1, 128>}, {pipeline_mode = #tpu.pipeline_mode<synchronous>, transform_indices = @transform_8, window_bounds = array<i64: 3, 96, 64>}, {pipeline_mode = #tpu.pipeline_mode<synchronous>, transform_indices = @transform_9, window_bounds = array<i64: 3, 1, 64>}, {pipeline_mode = #tpu.pipeline_mode<synchronous>, transform_indices = @transform_10, window_bounds = array<i64: 1, 64>}, {pipeline_mode = #tpu.pipeline_mode<synchronous>, transform_indices = @transform_11, window_bounds = array<i64: 1, 64>}, {transform_indices = @transform_12, window_bounds = array<i64: 32, 64>}]} {
    %0 = tpu.iota {dimensions = array<i32: 0>} : vector<32x1xi32>
    %c16_i32 = arith.constant 16 : i32
    %c0_i32 = arith.constant 0 : i32
    %1 = arith.cmpi eq, %c16_i32, %c0_i32 : i32
    %c1_i32 = arith.constant 1 : i32
    %2 = arith.select %1, %c1_i32, %c16_i32 : i32
    %3 = vector.broadcast %2 : i32 to vector<32x1xi32>
    %4 = arith.remsi %0, %3 : vector<32x1xi32>
    %c0_i32_0 = arith.constant 0 : i32
    %5 = vector.broadcast %c0_i32_0 : i32 to vector<32x1xi32>
    %6 = arith.cmpi ne, %4, %5 : vector<32x1xi32>
    %c0_i32_1 = arith.constant 0 : i32
    %7 = vector.broadcast %c0_i32_1 : i32 to vector<32x1xi32>
    %8 = arith.cmpi slt, %4, %7 : vector<32x1xi32>
    %c0_i32_2 = arith.constant 0 : i32
    %9 = arith.cmpi slt, %2, %c0_i32_2 : i32
    %10 = vector.broadcast %9 : i1 to vector<32x1xi1>
    %11 = vector.broadcast %10 : vector<32x1xi1> to vector<32x1xi1>
    %12 = arith.xori %8, %11 : vector<32x1xi1>
    %13 = arith.andi %12, %6 : vector<32x1xi1>
    %14 = vector.broadcast %2 : i32 to vector<32x1xi32>
    %15 = arith.addi %4, %14 : vector<32x1xi32>
    %16 = arith.select %13, %15, %4 : vector<32x1xi1>, vector<32x1xi32>
    %c3_i32 = arith.constant 3 : i32
    %17 = vector.broadcast %c3_i32 : i32 to vector<32x1xi32>
    %18 = arith.cmpi sge, %16, %17 : vector<32x1xi32>
    %c19_i32 = arith.constant 19 : i32
    %19 = vector.broadcast %c19_i32 : i32 to vector<32x1xi32>
    %20 = arith.cmpi slt, %16, %19 : vector<32x1xi32>
    %21 = arith.andi %18, %20 : vector<32x1xi1>
    %c2_i32 = arith.constant 2 : i32
    %22 = vector.broadcast %c2_i32 : i32 to vector<32x1xi32>
    %23 = arith.cmpi sge, %16, %22 : vector<32x1xi32>
    %c18_i32 = arith.constant 18 : i32
    %24 = vector.broadcast %c18_i32 : i32 to vector<32x1xi32>
    %25 = arith.cmpi slt, %16, %24 : vector<32x1xi32>
    %26 = arith.andi %23, %25 : vector<32x1xi1>
    %c1_i32_3 = arith.constant 1 : i32
    %27 = vector.broadcast %c1_i32_3 : i32 to vector<32x1xi32>
    %28 = arith.cmpi sge, %16, %27 : vector<32x1xi32>
    %c17_i32 = arith.constant 17 : i32
    %29 = vector.broadcast %c17_i32 : i32 to vector<32x1xi32>
    %30 = arith.cmpi slt, %16, %29 : vector<32x1xi32>
    %31 = arith.andi %28, %30 : vector<32x1xi1>
    %c-1_i32 = arith.constant -1 : i32
    %32 = vector.broadcast %c-1_i32 : i32 to vector<32x1xi32>
    %33 = arith.cmpi sge, %16, %32 : vector<32x1xi32>
    %c15_i32 = arith.constant 15 : i32
    %34 = vector.broadcast %c15_i32 : i32 to vector<32x1xi32>
    %35 = arith.cmpi slt, %16, %34 : vector<32x1xi32>
    %36 = arith.andi %33, %35 : vector<32x1xi1>
    %c-2_i32 = arith.constant -2 : i32
    %37 = vector.broadcast %c-2_i32 : i32 to vector<32x1xi32>
    %38 = arith.cmpi sge, %16, %37 : vector<32x1xi32>
    %c14_i32 = arith.constant 14 : i32
    %39 = vector.broadcast %c14_i32 : i32 to vector<32x1xi32>
    %40 = arith.cmpi slt, %16, %39 : vector<32x1xi32>
    %41 = arith.andi %38, %40 : vector<32x1xi1>
    %c-3_i32 = arith.constant -3 : i32
    %42 = vector.broadcast %c-3_i32 : i32 to vector<32x1xi32>
    %43 = arith.cmpi sge, %16, %42 : vector<32x1xi32>
    %c13_i32 = arith.constant 13 : i32
    %44 = vector.broadcast %c13_i32 : i32 to vector<32x1xi32>
    %45 = arith.cmpi slt, %16, %44 : vector<32x1xi32>
    %46 = arith.andi %43, %45 : vector<32x1xi1>
    %c0 = arith.constant 0 : index
    %c0_4 = arith.constant 0 : index
    %47 = vector.load %arg1[%c0, %c0_4] : memref<32x1xi32, #tpu.memory_space<vmem>>, vector<32x1xi32>
    %48 = tpu.iota {dimensions = array<i32: 1>} : vector<32x32xi32>
    %49 = vector.broadcast %47 : vector<32x1xi32> to vector<32x32xi32>
    %50 = arith.cmpi eq, %49, %48 : vector<32x32xi32>
    %cst = arith.constant 1.000000e+00 : f32
    %cst_5 = arith.constant 0.000000e+00 : f32
    %51 = vector.broadcast %cst : f32 to vector<32x32xf32>
    %52 = vector.broadcast %cst_5 : f32 to vector<32x32xf32>
    %53 = arith.select %50, %51, %52 : vector<32x32xi1>, vector<32x32xf32>
    %54 = arith.truncf %53 : vector<32x32xf32> to vector<32x32xbf16>
    %c0_6 = arith.constant 0 : index
    %c0_7 = arith.constant 0 : index
    %55 = vector.load %arg2[%c0_6, %c0_7] : memref<32x64xbf16, #tpu.memory_space<vmem>>, vector<32x64xbf16>
    %cst_8 = arith.constant dense<0.000000e+00> : vector<32x64xf32>
    %56 = tpu.matmul %54, %55, %cst_8 {dimension_numbers = #tpu.dot_dimension_numbers<[1], [0], [0], [1], [0, 0, 1, 1], [], []>} : vector<32x32xbf16>, vector<32x64xbf16>, vector<32x64xf32> -> vector<32x64xf32>
    %57 = arith.truncf %56 : vector<32x64xf32> to vector<32x64xbf16>
    %c0_9 = arith.constant 0 : index
    %c0_10 = arith.constant 0 : index
    %c0_11 = arith.constant 0 : index
    %58 = vector.load %arg3[%c0_9, %c0_10, %c0_11] : memref<3x64x256xbf16, #tpu.memory_space<vmem>>, vector<1x64x256xbf16>
    %59 = vector.shape_cast %58 : vector<1x64x256xbf16> to vector<64x256xbf16>
    %c0_12 = arith.constant 0 : index
    %c0_13 = arith.constant 0 : index
    %c0_14 = arith.constant 0 : index
    %60 = vector.load %arg4[%c0_12, %c0_13, %c0_14] : memref<3x1x256xf32, #tpu.memory_space<vmem>>, vector<1x1x256xf32>
    %61 = vector.shape_cast %60 : vector<1x1x256xf32> to vector<1x256xf32>
    %c0_15 = arith.constant 0 : index
    %c0_16 = arith.constant 0 : index
    %c0_17 = arith.constant 0 : index
    %62 = vector.load %arg5[%c0_15, %c0_16, %c0_17] : memref<3x7x128xf32, #tpu.memory_space<vmem>>, vector<1x7x128xf32>
    %63 = vector.shape_cast %62 : vector<1x7x128xf32> to vector<7x128xf32>
    %c0_18 = arith.constant 0 : index
    %c0_19 = arith.constant 0 : index
    %c0_20 = arith.constant 0 : index
    %64 = vector.load %arg6[%c0_18, %c0_19, %c0_20] : memref<3x1x128xf32, #tpu.memory_space<vmem>>, vector<1x1x128xf32>
    %65 = vector.shape_cast %64 : vector<1x1x128xf32> to vector<1x128xf32>
    %c0_21 = arith.constant 0 : index
    %c0_22 = arith.constant 0 : index
    %c0_23 = arith.constant 0 : index
    %66 = vector.load %arg7[%c0_21, %c0_22, %c0_23] : memref<3x32x128xbf16, #tpu.memory_space<vmem>>, vector<1x32x128xbf16>
    %67 = vector.shape_cast %66 : vector<1x32x128xbf16> to vector<32x128xbf16>
    %c0_24 = arith.constant 0 : index
    %c0_25 = arith.constant 0 : index
    %c0_26 = arith.constant 0 : index
    %68 = vector.load %arg8[%c0_24, %c0_25, %c0_26] : memref<3x1x128xf32, #tpu.memory_space<vmem>>, vector<1x1x128xf32>
    %69 = vector.shape_cast %68 : vector<1x1x128xf32> to vector<1x128xf32>
    %c0_27 = arith.constant 0 : index
    %c0_28 = arith.constant 0 : index
    %c0_29 = arith.constant 0 : index
    %70 = vector.load %arg9[%c0_27, %c0_28, %c0_29] : memref<3x96x64xbf16, #tpu.memory_space<vmem>>, vector<1x96x64xbf16>
    %71 = vector.shape_cast %70 : vector<1x96x64xbf16> to vector<96x64xbf16>
    %c0_30 = arith.constant 0 : index
    %c0_31 = arith.constant 0 : index
    %c0_32 = arith.constant 0 : index
    %72 = vector.load %arg10[%c0_30, %c0_31, %c0_32] : memref<3x1x64xf32, #tpu.memory_space<vmem>>, vector<1x1x64xf32>
    %73 = vector.shape_cast %72 : vector<1x1x64xf32> to vector<1x64xf32>
    %cst_33 = arith.constant dense<0.000000e+00> : vector<32x256xf32>
    %74 = tpu.matmul %57, %59, %cst_33 {dimension_numbers = #tpu.dot_dimension_numbers<[1], [0], [0], [1], [0, 0, 1, 1], [], []>} : vector<32x64xbf16>, vector<64x256xbf16>, vector<32x256xf32> -> vector<32x256xf32>
    %75 = vector.broadcast %61 : vector<1x256xf32> to vector<32x256xf32>
    %76 = arith.addf %74, %75 : vector<32x256xf32>
    %77 = vector.extract_strided_slice %76 {offsets = [0, 0], sizes = [32, 128], strides = [1, 1]} : vector<32x256xf32> to vector<32x128xf32>
    %78 = vector.extract_strided_slice %76 {offsets = [0, 128], sizes = [32, 128], strides = [1, 1]} : vector<32x256xf32> to vector<32x128xf32>
    %79 = vector.extract_strided_slice %63 {offsets = [3, 0], sizes = [1, 128], strides = [1, 1]} : vector<7x128xf32> to vector<1x128xf32>
    %80 = vector.broadcast %79 : vector<1x128xf32> to vector<32x128xf32>
    %81 = arith.mulf %78, %80 : vector<32x128xf32>
    %82 = vector.broadcast %65 : vector<1x128xf32> to vector<32x128xf32>
    %83 = arith.addf %81, %82 : vector<32x128xf32>
    %c3_i32_34 = arith.constant 3 : i32
    %84 = tpu.dynamic_rotate %78 by %c3_i32_34 dim 0 : vector<32x128xf32>, i32 -> vector<32x128xf32>
    %cst_35 = arith.constant 0.000000e+00 : f32
    %85 = vector.shape_cast %21 : vector<32x1xi1> to vector<32x1xi1>
    %86 = vector.broadcast %85 : vector<32x1xi1> to vector<32x128xi1>
    %87 = vector.broadcast %cst_35 : f32 to vector<32x128xf32>
    %88 = arith.select %86, %84, %87 : vector<32x128xi1>, vector<32x128xf32>
    %89 = vector.extract_strided_slice %63 {offsets = [0, 0], sizes = [1, 128], strides = [1, 1]} : vector<7x128xf32> to vector<1x128xf32>
    %90 = vector.broadcast %89 : vector<1x128xf32> to vector<32x128xf32>
    %91 = arith.mulf %88, %90 : vector<32x128xf32>
    %92 = arith.addf %83, %91 : vector<32x128xf32>
    %c2_i32_36 = arith.constant 2 : i32
    %93 = tpu.dynamic_rotate %78 by %c2_i32_36 dim 0 : vector<32x128xf32>, i32 -> vector<32x128xf32>
    %cst_37 = arith.constant 0.000000e+00 : f32
    %94 = vector.shape_cast %26 : vector<32x1xi1> to vector<32x1xi1>
    %95 = vector.broadcast %94 : vector<32x1xi1> to vector<32x128xi1>
    %96 = vector.broadcast %cst_37 : f32 to vector<32x128xf32>
    %97 = arith.select %95, %93, %96 : vector<32x128xi1>, vector<32x128xf32>
    %98 = vector.extract_strided_slice %63 {offsets = [1, 0], sizes = [1, 128], strides = [1, 1]} : vector<7x128xf32> to vector<1x128xf32>
    %99 = vector.broadcast %98 : vector<1x128xf32> to vector<32x128xf32>
    %100 = arith.mulf %97, %99 : vector<32x128xf32>
    %101 = arith.addf %92, %100 : vector<32x128xf32>
    %c1_i32_38 = arith.constant 1 : i32
    %102 = tpu.dynamic_rotate %78 by %c1_i32_38 dim 0 : vector<32x128xf32>, i32 -> vector<32x128xf32>
    %cst_39 = arith.constant 0.000000e+00 : f32
    %103 = vector.shape_cast %31 : vector<32x1xi1> to vector<32x1xi1>
    %104 = vector.broadcast %103 : vector<32x1xi1> to vector<32x128xi1>
    %105 = vector.broadcast %cst_39 : f32 to vector<32x128xf32>
    %106 = arith.select %104, %102, %105 : vector<32x128xi1>, vector<32x128xf32>
    %107 = vector.extract_strided_slice %63 {offsets = [2, 0], sizes = [1, 128], strides = [1, 1]} : vector<7x128xf32> to vector<1x128xf32>
    %108 = vector.broadcast %107 : vector<1x128xf32> to vector<32x128xf32>
    %109 = arith.mulf %106, %108 : vector<32x128xf32>
    %110 = arith.addf %101, %109 : vector<32x128xf32>
    %c31_i32 = arith.constant 31 : i32
    %111 = tpu.dynamic_rotate %78 by %c31_i32 dim 0 : vector<32x128xf32>, i32 -> vector<32x128xf32>
    %cst_40 = arith.constant 0.000000e+00 : f32
    %112 = vector.shape_cast %36 : vector<32x1xi1> to vector<32x1xi1>
    %113 = vector.broadcast %112 : vector<32x1xi1> to vector<32x128xi1>
    %114 = vector.broadcast %cst_40 : f32 to vector<32x128xf32>
    %115 = arith.select %113, %111, %114 : vector<32x128xi1>, vector<32x128xf32>
    %116 = vector.extract_strided_slice %63 {offsets = [4, 0], sizes = [1, 128], strides = [1, 1]} : vector<7x128xf32> to vector<1x128xf32>
    %117 = vector.broadcast %116 : vector<1x128xf32> to vector<32x128xf32>
    %118 = arith.mulf %115, %117 : vector<32x128xf32>
    %119 = arith.addf %110, %118 : vector<32x128xf32>
    %c30_i32 = arith.constant 30 : i32
    %120 = tpu.dynamic_rotate %78 by %c30_i32 dim 0 : vector<32x128xf32>, i32 -> vector<32x128xf32>
    %cst_41 = arith.constant 0.000000e+00 : f32
    %121 = vector.shape_cast %41 : vector<32x1xi1> to vector<32x1xi1>
    %122 = vector.broadcast %121 : vector<32x1xi1> to vector<32x128xi1>
    %123 = vector.broadcast %cst_41 : f32 to vector<32x128xf32>
    %124 = arith.select %122, %120, %123 : vector<32x128xi1>, vector<32x128xf32>
    %125 = vector.extract_strided_slice %63 {offsets = [5, 0], sizes = [1, 128], strides = [1, 1]} : vector<7x128xf32> to vector<1x128xf32>
    %126 = vector.broadcast %125 : vector<1x128xf32> to vector<32x128xf32>
    %127 = arith.mulf %124, %126 : vector<32x128xf32>
    %128 = arith.addf %119, %127 : vector<32x128xf32>
    %c29_i32 = arith.constant 29 : i32
    %129 = tpu.dynamic_rotate %78 by %c29_i32 dim 0 : vector<32x128xf32>, i32 -> vector<32x128xf32>
    %cst_42 = arith.constant 0.000000e+00 : f32
    %130 = vector.shape_cast %46 : vector<32x1xi1> to vector<32x1xi1>
    %131 = vector.broadcast %130 : vector<32x1xi1> to vector<32x128xi1>
    %132 = vector.broadcast %cst_42 : f32 to vector<32x128xf32>
    %133 = arith.select %131, %129, %132 : vector<32x128xi1>, vector<32x128xf32>
    %134 = vector.extract_strided_slice %63 {offsets = [6, 0], sizes = [1, 128], strides = [1, 1]} : vector<7x128xf32> to vector<1x128xf32>
    %135 = vector.broadcast %134 : vector<1x128xf32> to vector<32x128xf32>
    %136 = arith.mulf %133, %135 : vector<32x128xf32>
    %137 = arith.addf %128, %136 : vector<32x128xf32>
    %138 = arith.mulf %77, %137 : vector<32x128xf32>
    %139 = vector.extract_strided_slice %138 {offsets = [0, 0], sizes = [32, 32], strides = [1, 1]} : vector<32x128xf32> to vector<32x32xf32>
    %140 = arith.truncf %139 : vector<32x32xf32> to vector<32x32xbf16>
    %cst_43 = arith.constant dense<0.000000e+00> : vector<32x128xf32>
    %141 = tpu.matmul %140, %67, %cst_43 {dimension_numbers = #tpu.dot_dimension_numbers<[1], [0], [0], [1], [0, 0, 1, 1], [], []>} : vector<32x32xbf16>, vector<32x128xbf16>, vector<32x128xf32> -> vector<32x128xf32>
    %142 = vector.broadcast %69 : vector<1x128xf32> to vector<32x128xf32>
    %143 = arith.addf %141, %142 : vector<32x128xf32>
    %144 = arith.mulf %143, %137 : vector<32x128xf32>
    %145 = vector.extract_strided_slice %144 {offsets = [0, 0], sizes = [32, 96], strides = [1, 1]} : vector<32x128xf32> to vector<32x96xf32>
    %146 = arith.truncf %145 : vector<32x96xf32> to vector<32x96xbf16>
    %cst_44 = arith.constant dense<0.000000e+00> : vector<32x64xf32>
    %147 = tpu.matmul %146, %71, %cst_44 {dimension_numbers = #tpu.dot_dimension_numbers<[1], [0], [0], [1], [0, 0, 1, 1], [], []>} : vector<32x96xbf16>, vector<96x64xbf16>, vector<32x64xf32> -> vector<32x64xf32>
    %148 = vector.broadcast %73 : vector<1x64xf32> to vector<32x64xf32>
    %149 = arith.addf %147, %148 : vector<32x64xf32>
    %cst_45 = arith.constant 0.000000e+00 : f32
    %150 = vector.broadcast %cst_45 : f32 to vector<32x64xf32>
    %151 = arith.maximumf %149, %150 : vector<32x64xf32>
    %152 = arith.truncf %151 : vector<32x64xf32> to vector<32x64xbf16>
    %c1 = arith.constant 1 : index
    %c0_46 = arith.constant 0 : index
    %c0_47 = arith.constant 0 : index
    %153 = vector.load %arg3[%c1, %c0_46, %c0_47] : memref<3x64x256xbf16, #tpu.memory_space<vmem>>, vector<1x64x256xbf16>
    %154 = vector.shape_cast %153 : vector<1x64x256xbf16> to vector<64x256xbf16>
    %c1_48 = arith.constant 1 : index
    %c0_49 = arith.constant 0 : index
    %c0_50 = arith.constant 0 : index
    %155 = vector.load %arg4[%c1_48, %c0_49, %c0_50] : memref<3x1x256xf32, #tpu.memory_space<vmem>>, vector<1x1x256xf32>
    %156 = vector.shape_cast %155 : vector<1x1x256xf32> to vector<1x256xf32>
    %c1_51 = arith.constant 1 : index
    %c0_52 = arith.constant 0 : index
    %c0_53 = arith.constant 0 : index
    %157 = vector.load %arg5[%c1_51, %c0_52, %c0_53] : memref<3x7x128xf32, #tpu.memory_space<vmem>>, vector<1x7x128xf32>
    %158 = vector.shape_cast %157 : vector<1x7x128xf32> to vector<7x128xf32>
    %c1_54 = arith.constant 1 : index
    %c0_55 = arith.constant 0 : index
    %c0_56 = arith.constant 0 : index
    %159 = vector.load %arg6[%c1_54, %c0_55, %c0_56] : memref<3x1x128xf32, #tpu.memory_space<vmem>>, vector<1x1x128xf32>
    %160 = vector.shape_cast %159 : vector<1x1x128xf32> to vector<1x128xf32>
    %c1_57 = arith.constant 1 : index
    %c0_58 = arith.constant 0 : index
    %c0_59 = arith.constant 0 : index
    %161 = vector.load %arg7[%c1_57, %c0_58, %c0_59] : memref<3x32x128xbf16, #tpu.memory_space<vmem>>, vector<1x32x128xbf16>
    %162 = vector.shape_cast %161 : vector<1x32x128xbf16> to vector<32x128xbf16>
    %c1_60 = arith.constant 1 : index
    %c0_61 = arith.constant 0 : index
    %c0_62 = arith.constant 0 : index
    %163 = vector.load %arg8[%c1_60, %c0_61, %c0_62] : memref<3x1x128xf32, #tpu.memory_space<vmem>>, vector<1x1x128xf32>
    %164 = vector.shape_cast %163 : vector<1x1x128xf32> to vector<1x128xf32>
    %c1_63 = arith.constant 1 : index
    %c0_64 = arith.constant 0 : index
    %c0_65 = arith.constant 0 : index
    %165 = vector.load %arg9[%c1_63, %c0_64, %c0_65] : memref<3x96x64xbf16, #tpu.memory_space<vmem>>, vector<1x96x64xbf16>
    %166 = vector.shape_cast %165 : vector<1x96x64xbf16> to vector<96x64xbf16>
    %c1_66 = arith.constant 1 : index
    %c0_67 = arith.constant 0 : index
    %c0_68 = arith.constant 0 : index
    %167 = vector.load %arg10[%c1_66, %c0_67, %c0_68] : memref<3x1x64xf32, #tpu.memory_space<vmem>>, vector<1x1x64xf32>
    %168 = vector.shape_cast %167 : vector<1x1x64xf32> to vector<1x64xf32>
    %cst_69 = arith.constant dense<0.000000e+00> : vector<32x256xf32>
    %169 = tpu.matmul %152, %154, %cst_69 {dimension_numbers = #tpu.dot_dimension_numbers<[1], [0], [0], [1], [0, 0, 1, 1], [], []>} : vector<32x64xbf16>, vector<64x256xbf16>, vector<32x256xf32> -> vector<32x256xf32>
    %170 = vector.broadcast %156 : vector<1x256xf32> to vector<32x256xf32>
    %171 = arith.addf %169, %170 : vector<32x256xf32>
    %172 = vector.extract_strided_slice %171 {offsets = [0, 0], sizes = [32, 128], strides = [1, 1]} : vector<32x256xf32> to vector<32x128xf32>
    %173 = vector.extract_strided_slice %171 {offsets = [0, 128], sizes = [32, 128], strides = [1, 1]} : vector<32x256xf32> to vector<32x128xf32>
    %174 = vector.extract_strided_slice %158 {offsets = [3, 0], sizes = [1, 128], strides = [1, 1]} : vector<7x128xf32> to vector<1x128xf32>
    %175 = vector.broadcast %174 : vector<1x128xf32> to vector<32x128xf32>
    %176 = arith.mulf %173, %175 : vector<32x128xf32>
    %177 = vector.broadcast %160 : vector<1x128xf32> to vector<32x128xf32>
    %178 = arith.addf %176, %177 : vector<32x128xf32>
    %c3_i32_70 = arith.constant 3 : i32
    %179 = tpu.dynamic_rotate %173 by %c3_i32_70 dim 0 : vector<32x128xf32>, i32 -> vector<32x128xf32>
    %cst_71 = arith.constant 0.000000e+00 : f32
    %180 = vector.shape_cast %21 : vector<32x1xi1> to vector<32x1xi1>
    %181 = vector.broadcast %180 : vector<32x1xi1> to vector<32x128xi1>
    %182 = vector.broadcast %cst_71 : f32 to vector<32x128xf32>
    %183 = arith.select %181, %179, %182 : vector<32x128xi1>, vector<32x128xf32>
    %184 = vector.extract_strided_slice %158 {offsets = [0, 0], sizes = [1, 128], strides = [1, 1]} : vector<7x128xf32> to vector<1x128xf32>
    %185 = vector.broadcast %184 : vector<1x128xf32> to vector<32x128xf32>
    %186 = arith.mulf %183, %185 : vector<32x128xf32>
    %187 = arith.addf %178, %186 : vector<32x128xf32>
    %c2_i32_72 = arith.constant 2 : i32
    %188 = tpu.dynamic_rotate %173 by %c2_i32_72 dim 0 : vector<32x128xf32>, i32 -> vector<32x128xf32>
    %cst_73 = arith.constant 0.000000e+00 : f32
    %189 = vector.shape_cast %26 : vector<32x1xi1> to vector<32x1xi1>
    %190 = vector.broadcast %189 : vector<32x1xi1> to vector<32x128xi1>
    %191 = vector.broadcast %cst_73 : f32 to vector<32x128xf32>
    %192 = arith.select %190, %188, %191 : vector<32x128xi1>, vector<32x128xf32>
    %193 = vector.extract_strided_slice %158 {offsets = [1, 0], sizes = [1, 128], strides = [1, 1]} : vector<7x128xf32> to vector<1x128xf32>
    %194 = vector.broadcast %193 : vector<1x128xf32> to vector<32x128xf32>
    %195 = arith.mulf %192, %194 : vector<32x128xf32>
    %196 = arith.addf %187, %195 : vector<32x128xf32>
    %c1_i32_74 = arith.constant 1 : i32
    %197 = tpu.dynamic_rotate %173 by %c1_i32_74 dim 0 : vector<32x128xf32>, i32 -> vector<32x128xf32>
    %cst_75 = arith.constant 0.000000e+00 : f32
    %198 = vector.shape_cast %31 : vector<32x1xi1> to vector<32x1xi1>
    %199 = vector.broadcast %198 : vector<32x1xi1> to vector<32x128xi1>
    %200 = vector.broadcast %cst_75 : f32 to vector<32x128xf32>
    %201 = arith.select %199, %197, %200 : vector<32x128xi1>, vector<32x128xf32>
    %202 = vector.extract_strided_slice %158 {offsets = [2, 0], sizes = [1, 128], strides = [1, 1]} : vector<7x128xf32> to vector<1x128xf32>
    %203 = vector.broadcast %202 : vector<1x128xf32> to vector<32x128xf32>
    %204 = arith.mulf %201, %203 : vector<32x128xf32>
    %205 = arith.addf %196, %204 : vector<32x128xf32>
    %c31_i32_76 = arith.constant 31 : i32
    %206 = tpu.dynamic_rotate %173 by %c31_i32_76 dim 0 : vector<32x128xf32>, i32 -> vector<32x128xf32>
    %cst_77 = arith.constant 0.000000e+00 : f32
    %207 = vector.shape_cast %36 : vector<32x1xi1> to vector<32x1xi1>
    %208 = vector.broadcast %207 : vector<32x1xi1> to vector<32x128xi1>
    %209 = vector.broadcast %cst_77 : f32 to vector<32x128xf32>
    %210 = arith.select %208, %206, %209 : vector<32x128xi1>, vector<32x128xf32>
    %211 = vector.extract_strided_slice %158 {offsets = [4, 0], sizes = [1, 128], strides = [1, 1]} : vector<7x128xf32> to vector<1x128xf32>
    %212 = vector.broadcast %211 : vector<1x128xf32> to vector<32x128xf32>
    %213 = arith.mulf %210, %212 : vector<32x128xf32>
    %214 = arith.addf %205, %213 : vector<32x128xf32>
    %c30_i32_78 = arith.constant 30 : i32
    %215 = tpu.dynamic_rotate %173 by %c30_i32_78 dim 0 : vector<32x128xf32>, i32 -> vector<32x128xf32>
    %cst_79 = arith.constant 0.000000e+00 : f32
    %216 = vector.shape_cast %41 : vector<32x1xi1> to vector<32x1xi1>
    %217 = vector.broadcast %216 : vector<32x1xi1> to vector<32x128xi1>
    %218 = vector.broadcast %cst_79 : f32 to vector<32x128xf32>
    %219 = arith.select %217, %215, %218 : vector<32x128xi1>, vector<32x128xf32>
    %220 = vector.extract_strided_slice %158 {offsets = [5, 0], sizes = [1, 128], strides = [1, 1]} : vector<7x128xf32> to vector<1x128xf32>
    %221 = vector.broadcast %220 : vector<1x128xf32> to vector<32x128xf32>
    %222 = arith.mulf %219, %221 : vector<32x128xf32>
    %223 = arith.addf %214, %222 : vector<32x128xf32>
    %c29_i32_80 = arith.constant 29 : i32
    %224 = tpu.dynamic_rotate %173 by %c29_i32_80 dim 0 : vector<32x128xf32>, i32 -> vector<32x128xf32>
    %cst_81 = arith.constant 0.000000e+00 : f32
    %225 = vector.shape_cast %46 : vector<32x1xi1> to vector<32x1xi1>
    %226 = vector.broadcast %225 : vector<32x1xi1> to vector<32x128xi1>
    %227 = vector.broadcast %cst_81 : f32 to vector<32x128xf32>
    %228 = arith.select %226, %224, %227 : vector<32x128xi1>, vector<32x128xf32>
    %229 = vector.extract_strided_slice %158 {offsets = [6, 0], sizes = [1, 128], strides = [1, 1]} : vector<7x128xf32> to vector<1x128xf32>
    %230 = vector.broadcast %229 : vector<1x128xf32> to vector<32x128xf32>
    %231 = arith.mulf %228, %230 : vector<32x128xf32>
    %232 = arith.addf %223, %231 : vector<32x128xf32>
    %233 = arith.mulf %172, %232 : vector<32x128xf32>
    %234 = vector.extract_strided_slice %233 {offsets = [0, 0], sizes = [32, 32], strides = [1, 1]} : vector<32x128xf32> to vector<32x32xf32>
    %235 = arith.truncf %234 : vector<32x32xf32> to vector<32x32xbf16>
    %cst_82 = arith.constant dense<0.000000e+00> : vector<32x128xf32>
    %236 = tpu.matmul %235, %162, %cst_82 {dimension_numbers = #tpu.dot_dimension_numbers<[1], [0], [0], [1], [0, 0, 1, 1], [], []>} : vector<32x32xbf16>, vector<32x128xbf16>, vector<32x128xf32> -> vector<32x128xf32>
    %237 = vector.broadcast %164 : vector<1x128xf32> to vector<32x128xf32>
    %238 = arith.addf %236, %237 : vector<32x128xf32>
    %239 = arith.mulf %238, %232 : vector<32x128xf32>
    %240 = vector.extract_strided_slice %239 {offsets = [0, 0], sizes = [32, 96], strides = [1, 1]} : vector<32x128xf32> to vector<32x96xf32>
    %241 = arith.truncf %240 : vector<32x96xf32> to vector<32x96xbf16>
    %cst_83 = arith.constant dense<0.000000e+00> : vector<32x64xf32>
    %242 = tpu.matmul %241, %166, %cst_83 {dimension_numbers = #tpu.dot_dimension_numbers<[1], [0], [0], [1], [0, 0, 1, 1], [], []>} : vector<32x96xbf16>, vector<96x64xbf16>, vector<32x64xf32> -> vector<32x64xf32>
    %243 = vector.broadcast %168 : vector<1x64xf32> to vector<32x64xf32>
    %244 = arith.addf %242, %243 : vector<32x64xf32>
    %cst_84 = arith.constant 0.000000e+00 : f32
    %245 = vector.broadcast %cst_84 : f32 to vector<32x64xf32>
    %246 = arith.maximumf %244, %245 : vector<32x64xf32>
    %247 = arith.truncf %246 : vector<32x64xf32> to vector<32x64xbf16>
    %c2 = arith.constant 2 : index
    %c0_85 = arith.constant 0 : index
    %c0_86 = arith.constant 0 : index
    %248 = vector.load %arg3[%c2, %c0_85, %c0_86] : memref<3x64x256xbf16, #tpu.memory_space<vmem>>, vector<1x64x256xbf16>
    %249 = vector.shape_cast %248 : vector<1x64x256xbf16> to vector<64x256xbf16>
    %c2_87 = arith.constant 2 : index
    %c0_88 = arith.constant 0 : index
    %c0_89 = arith.constant 0 : index
    %250 = vector.load %arg4[%c2_87, %c0_88, %c0_89] : memref<3x1x256xf32, #tpu.memory_space<vmem>>, vector<1x1x256xf32>
    %251 = vector.shape_cast %250 : vector<1x1x256xf32> to vector<1x256xf32>
    %c2_90 = arith.constant 2 : index
    %c0_91 = arith.constant 0 : index
    %c0_92 = arith.constant 0 : index
    %252 = vector.load %arg5[%c2_90, %c0_91, %c0_92] : memref<3x7x128xf32, #tpu.memory_space<vmem>>, vector<1x7x128xf32>
    %253 = vector.shape_cast %252 : vector<1x7x128xf32> to vector<7x128xf32>
    %c2_93 = arith.constant 2 : index
    %c0_94 = arith.constant 0 : index
    %c0_95 = arith.constant 0 : index
    %254 = vector.load %arg6[%c2_93, %c0_94, %c0_95] : memref<3x1x128xf32, #tpu.memory_space<vmem>>, vector<1x1x128xf32>
    %255 = vector.shape_cast %254 : vector<1x1x128xf32> to vector<1x128xf32>
    %c2_96 = arith.constant 2 : index
    %c0_97 = arith.constant 0 : index
    %c0_98 = arith.constant 0 : index
    %256 = vector.load %arg7[%c2_96, %c0_97, %c0_98] : memref<3x32x128xbf16, #tpu.memory_space<vmem>>, vector<1x32x128xbf16>
    %257 = vector.shape_cast %256 : vector<1x32x128xbf16> to vector<32x128xbf16>
    %c2_99 = arith.constant 2 : index
    %c0_100 = arith.constant 0 : index
    %c0_101 = arith.constant 0 : index
    %258 = vector.load %arg8[%c2_99, %c0_100, %c0_101] : memref<3x1x128xf32, #tpu.memory_space<vmem>>, vector<1x1x128xf32>
    %259 = vector.shape_cast %258 : vector<1x1x128xf32> to vector<1x128xf32>
    %c2_102 = arith.constant 2 : index
    %c0_103 = arith.constant 0 : index
    %c0_104 = arith.constant 0 : index
    %260 = vector.load %arg9[%c2_102, %c0_103, %c0_104] : memref<3x96x64xbf16, #tpu.memory_space<vmem>>, vector<1x96x64xbf16>
    %261 = vector.shape_cast %260 : vector<1x96x64xbf16> to vector<96x64xbf16>
    %c2_105 = arith.constant 2 : index
    %c0_106 = arith.constant 0 : index
    %c0_107 = arith.constant 0 : index
    %262 = vector.load %arg10[%c2_105, %c0_106, %c0_107] : memref<3x1x64xf32, #tpu.memory_space<vmem>>, vector<1x1x64xf32>
    %263 = vector.shape_cast %262 : vector<1x1x64xf32> to vector<1x64xf32>
    %cst_108 = arith.constant dense<0.000000e+00> : vector<32x256xf32>
    %264 = tpu.matmul %247, %249, %cst_108 {dimension_numbers = #tpu.dot_dimension_numbers<[1], [0], [0], [1], [0, 0, 1, 1], [], []>} : vector<32x64xbf16>, vector<64x256xbf16>, vector<32x256xf32> -> vector<32x256xf32>
    %265 = vector.broadcast %251 : vector<1x256xf32> to vector<32x256xf32>
    %266 = arith.addf %264, %265 : vector<32x256xf32>
    %267 = vector.extract_strided_slice %266 {offsets = [0, 0], sizes = [32, 128], strides = [1, 1]} : vector<32x256xf32> to vector<32x128xf32>
    %268 = vector.extract_strided_slice %266 {offsets = [0, 128], sizes = [32, 128], strides = [1, 1]} : vector<32x256xf32> to vector<32x128xf32>
    %269 = vector.extract_strided_slice %253 {offsets = [3, 0], sizes = [1, 128], strides = [1, 1]} : vector<7x128xf32> to vector<1x128xf32>
    %270 = vector.broadcast %269 : vector<1x128xf32> to vector<32x128xf32>
    %271 = arith.mulf %268, %270 : vector<32x128xf32>
    %272 = vector.broadcast %255 : vector<1x128xf32> to vector<32x128xf32>
    %273 = arith.addf %271, %272 : vector<32x128xf32>
    %c3_i32_109 = arith.constant 3 : i32
    %274 = tpu.dynamic_rotate %268 by %c3_i32_109 dim 0 : vector<32x128xf32>, i32 -> vector<32x128xf32>
    %cst_110 = arith.constant 0.000000e+00 : f32
    %275 = vector.shape_cast %21 : vector<32x1xi1> to vector<32x1xi1>
    %276 = vector.broadcast %275 : vector<32x1xi1> to vector<32x128xi1>
    %277 = vector.broadcast %cst_110 : f32 to vector<32x128xf32>
    %278 = arith.select %276, %274, %277 : vector<32x128xi1>, vector<32x128xf32>
    %279 = vector.extract_strided_slice %253 {offsets = [0, 0], sizes = [1, 128], strides = [1, 1]} : vector<7x128xf32> to vector<1x128xf32>
    %280 = vector.broadcast %279 : vector<1x128xf32> to vector<32x128xf32>
    %281 = arith.mulf %278, %280 : vector<32x128xf32>
    %282 = arith.addf %273, %281 : vector<32x128xf32>
    %c2_i32_111 = arith.constant 2 : i32
    %283 = tpu.dynamic_rotate %268 by %c2_i32_111 dim 0 : vector<32x128xf32>, i32 -> vector<32x128xf32>
    %cst_112 = arith.constant 0.000000e+00 : f32
    %284 = vector.shape_cast %26 : vector<32x1xi1> to vector<32x1xi1>
    %285 = vector.broadcast %284 : vector<32x1xi1> to vector<32x128xi1>
    %286 = vector.broadcast %cst_112 : f32 to vector<32x128xf32>
    %287 = arith.select %285, %283, %286 : vector<32x128xi1>, vector<32x128xf32>
    %288 = vector.extract_strided_slice %253 {offsets = [1, 0], sizes = [1, 128], strides = [1, 1]} : vector<7x128xf32> to vector<1x128xf32>
    %289 = vector.broadcast %288 : vector<1x128xf32> to vector<32x128xf32>
    %290 = arith.mulf %287, %289 : vector<32x128xf32>
    %291 = arith.addf %282, %290 : vector<32x128xf32>
    %c1_i32_113 = arith.constant 1 : i32
    %292 = tpu.dynamic_rotate %268 by %c1_i32_113 dim 0 : vector<32x128xf32>, i32 -> vector<32x128xf32>
    %cst_114 = arith.constant 0.000000e+00 : f32
    %293 = vector.shape_cast %31 : vector<32x1xi1> to vector<32x1xi1>
    %294 = vector.broadcast %293 : vector<32x1xi1> to vector<32x128xi1>
    %295 = vector.broadcast %cst_114 : f32 to vector<32x128xf32>
    %296 = arith.select %294, %292, %295 : vector<32x128xi1>, vector<32x128xf32>
    %297 = vector.extract_strided_slice %253 {offsets = [2, 0], sizes = [1, 128], strides = [1, 1]} : vector<7x128xf32> to vector<1x128xf32>
    %298 = vector.broadcast %297 : vector<1x128xf32> to vector<32x128xf32>
    %299 = arith.mulf %296, %298 : vector<32x128xf32>
    %300 = arith.addf %291, %299 : vector<32x128xf32>
    %c31_i32_115 = arith.constant 31 : i32
    %301 = tpu.dynamic_rotate %268 by %c31_i32_115 dim 0 : vector<32x128xf32>, i32 -> vector<32x128xf32>
    %cst_116 = arith.constant 0.000000e+00 : f32
    %302 = vector.shape_cast %36 : vector<32x1xi1> to vector<32x1xi1>
    %303 = vector.broadcast %302 : vector<32x1xi1> to vector<32x128xi1>
    %304 = vector.broadcast %cst_116 : f32 to vector<32x128xf32>
    %305 = arith.select %303, %301, %304 : vector<32x128xi1>, vector<32x128xf32>
    %306 = vector.extract_strided_slice %253 {offsets = [4, 0], sizes = [1, 128], strides = [1, 1]} : vector<7x128xf32> to vector<1x128xf32>
    %307 = vector.broadcast %306 : vector<1x128xf32> to vector<32x128xf32>
    %308 = arith.mulf %305, %307 : vector<32x128xf32>
    %309 = arith.addf %300, %308 : vector<32x128xf32>
    %c30_i32_117 = arith.constant 30 : i32
    %310 = tpu.dynamic_rotate %268 by %c30_i32_117 dim 0 : vector<32x128xf32>, i32 -> vector<32x128xf32>
    %cst_118 = arith.constant 0.000000e+00 : f32
    %311 = vector.shape_cast %41 : vector<32x1xi1> to vector<32x1xi1>
    %312 = vector.broadcast %311 : vector<32x1xi1> to vector<32x128xi1>
    %313 = vector.broadcast %cst_118 : f32 to vector<32x128xf32>
    %314 = arith.select %312, %310, %313 : vector<32x128xi1>, vector<32x128xf32>
    %315 = vector.extract_strided_slice %253 {offsets = [5, 0], sizes = [1, 128], strides = [1, 1]} : vector<7x128xf32> to vector<1x128xf32>
    %316 = vector.broadcast %315 : vector<1x128xf32> to vector<32x128xf32>
    %317 = arith.mulf %314, %316 : vector<32x128xf32>
    %318 = arith.addf %309, %317 : vector<32x128xf32>
    %c29_i32_119 = arith.constant 29 : i32
    %319 = tpu.dynamic_rotate %268 by %c29_i32_119 dim 0 : vector<32x128xf32>, i32 -> vector<32x128xf32>
    %cst_120 = arith.constant 0.000000e+00 : f32
    %320 = vector.shape_cast %46 : vector<32x1xi1> to vector<32x1xi1>
    %321 = vector.broadcast %320 : vector<32x1xi1> to vector<32x128xi1>
    %322 = vector.broadcast %cst_120 : f32 to vector<32x128xf32>
    %323 = arith.select %321, %319, %322 : vector<32x128xi1>, vector<32x128xf32>
    %324 = vector.extract_strided_slice %253 {offsets = [6, 0], sizes = [1, 128], strides = [1, 1]} : vector<7x128xf32> to vector<1x128xf32>
    %325 = vector.broadcast %324 : vector<1x128xf32> to vector<32x128xf32>
    %326 = arith.mulf %323, %325 : vector<32x128xf32>
    %327 = arith.addf %318, %326 : vector<32x128xf32>
    %328 = arith.mulf %267, %327 : vector<32x128xf32>
    %329 = vector.extract_strided_slice %328 {offsets = [0, 0], sizes = [32, 32], strides = [1, 1]} : vector<32x128xf32> to vector<32x32xf32>
    %330 = arith.truncf %329 : vector<32x32xf32> to vector<32x32xbf16>
    %cst_121 = arith.constant dense<0.000000e+00> : vector<32x128xf32>
    %331 = tpu.matmul %330, %257, %cst_121 {dimension_numbers = #tpu.dot_dimension_numbers<[1], [0], [0], [1], [0, 0, 1, 1], [], []>} : vector<32x32xbf16>, vector<32x128xbf16>, vector<32x128xf32> -> vector<32x128xf32>
    %332 = vector.broadcast %259 : vector<1x128xf32> to vector<32x128xf32>
    %333 = arith.addf %331, %332 : vector<32x128xf32>
    %334 = arith.mulf %333, %327 : vector<32x128xf32>
    %335 = vector.extract_strided_slice %334 {offsets = [0, 0], sizes = [32, 96], strides = [1, 1]} : vector<32x128xf32> to vector<32x96xf32>
    %336 = arith.truncf %335 : vector<32x96xf32> to vector<32x96xbf16>
    %cst_122 = arith.constant dense<0.000000e+00> : vector<32x64xf32>
    %337 = tpu.matmul %336, %261, %cst_122 {dimension_numbers = #tpu.dot_dimension_numbers<[1], [0], [0], [1], [0, 0, 1, 1], [], []>} : vector<32x96xbf16>, vector<96x64xbf16>, vector<32x64xf32> -> vector<32x64xf32>
    %338 = vector.broadcast %263 : vector<1x64xf32> to vector<32x64xf32>
    %339 = arith.addf %337, %338 : vector<32x64xf32>
    %cst_123 = arith.constant 0.000000e+00 : f32
    %340 = vector.broadcast %cst_123 : f32 to vector<32x64xf32>
    %341 = arith.maximumf %339, %340 : vector<32x64xf32>
    %342 = arith.truncf %341 : vector<32x64xf32> to vector<32x64xbf16>
    %343 = arith.extf %342 : vector<32x64xbf16> to vector<32x64xf32>
    %c0_124 = arith.constant 0 : index
    %c0_125 = arith.constant 0 : index
    %344 = vector.load %arg11[%c0_124, %c0_125] : memref<1x64xf32, #tpu.memory_space<vmem>>, vector<1x64xf32>
    %345 = vector.broadcast %344 : vector<1x64xf32> to vector<32x64xf32>
    %346 = arith.mulf %343, %345 : vector<32x64xf32>
    %c0_126 = arith.constant 0 : index
    %c0_127 = arith.constant 0 : index
    %347 = vector.load %arg12[%c0_126, %c0_127] : memref<1x64xf32, #tpu.memory_space<vmem>>, vector<1x64xf32>
    %348 = vector.broadcast %347 : vector<1x64xf32> to vector<32x64xf32>
    %349 = arith.addf %346, %348 : vector<32x64xf32>
    %c0_128 = arith.constant 0 : index
    %c0_129 = arith.constant 0 : index
    %350 = vector.load %arg13[%c0_128, %c0_129] : memref<32x64xf32, #tpu.memory_space<vmem>>, vector<32x64xf32>
    tpu.vector_store %arg13[%c0_128, %c0_129], %349 {strides = array<i32>} : memref<32x64xf32, #tpu.memory_space<vmem>>, vector<32x64xf32>,
    return
  }
  func.func @transform_0(%arg0: i32) -> (i32, i32) {
    %c0_i32 = arith.constant 0 : i32
    %c0_i32_0 = arith.constant 0 : i32
    return %arg0, %c0_i32 : i32, i32
  }
  func.func @transform_1(%arg0: i32) -> (i32, i32) {
    %c0_i32 = arith.constant 0 : i32
    %c0_i32_0 = arith.constant 0 : i32
    %c0_i32_1 = arith.constant 0 : i32
    return %c0_i32, %c0_i32_0 : i32, i32
  }
  func.func @transform_2(%arg0: i32) -> (i32, i32, i32) {
    %c0_i32 = arith.constant 0 : i32
    %c0_i32_0 = arith.constant 0 : i32
    %c0_i32_1 = arith.constant 0 : i32
    %c0_i32_2 = arith.constant 0 : i32
    return %c0_i32, %c0_i32_0, %c0_i32_1 : i32, i32, i32
  }
  func.func @transform_3(%arg0: i32) -> (i32, i32, i32) {
    %c0_i32 = arith.constant 0 : i32
    %c0_i32_0 = arith.constant 0 : i32
    %c0_i32_1 = arith.constant 0 : i32
    %c0_i32_2 = arith.constant 0 : i32
    return %c0_i32, %c0_i32_0, %c0_i32_1 : i32, i32, i32
  }
  func.func @transform_4(%arg0: i32) -> (i32, i32, i32) {
    %c0_i32 = arith.constant 0 : i32
    %c0_i32_0 = arith.constant 0 : i32
    %c0_i32_1 = arith.constant 0 : i32
    %c0_i32_2 = arith.constant 0 : i32
    return %c0_i32, %c0_i32_0, %c0_i32_1 : i32, i32, i32
  }
  func.func @transform_5(%arg0: i32) -> (i32, i32, i32) {
    %c0_i32 = arith.constant 0 : i32
    %c0_i32_0 = arith.constant 0 : i32
    %c0_i32_1 = arith.constant 0 : i32
    %c0_i32_2 = arith.constant 0 : i32
    return %c0_i32, %c0_i32_0, %c0_i32_1 : i32, i32, i32
  }
  func.func @transform_6(%arg0: i32) -> (i32, i32, i32) {
    %c0_i32 = arith.constant 0 : i32
    %c0_i32_0 = arith.constant 0 : i32
    %c0_i32_1 = arith.constant 0 : i32
    %c0_i32_2 = arith.constant 0 : i32
    return %c0_i32, %c0_i32_0, %c0_i32_1 : i32, i32, i32
  }
  func.func @transform_7(%arg0: i32) -> (i32, i32, i32) {
    %c0_i32 = arith.constant 0 : i32
    %c0_i32_0 = arith.constant 0 : i32
    %c0_i32_1 = arith.constant 0 : i32
    %c0_i32_2 = arith.constant 0 : i32
    return %c0_i32, %c0_i32_0, %c0_i32_1 : i32, i32, i32
  }
  func.func @transform_8(%arg0: i32) -> (i32, i32, i32) {
    %c0_i32 = arith.constant 0 : i32
    %c0_i32_0 = arith.constant 0 : i32
    %c0_i32_1 = arith.constant 0 : i32
    %c0_i32_2 = arith.constant 0 : i32
    return %c0_i32, %c0_i32_0, %c0_i32_1 : i32, i32, i32
  }
  func.func @transform_9(%arg0: i32) -> (i32, i32, i32) {
    %c0_i32 = arith.constant 0 : i32
    %c0_i32_0 = arith.constant 0 : i32
    %c0_i32_1 = arith.constant 0 : i32
    %c0_i32_2 = arith.constant 0 : i32
    return %c0_i32, %c0_i32_0, %c0_i32_1 : i32, i32, i32
  }
  func.func @transform_10(%arg0: i32) -> (i32, i32) {
    %c0_i32 = arith.constant 0 : i32
    %c0_i32_0 = arith.constant 0 : i32
    %c0_i32_1 = arith.constant 0 : i32
    return %c0_i32, %c0_i32_0 : i32, i32
  }
  func.func @transform_11(%arg0: i32) -> (i32, i32) {
    %c0_i32 = arith.constant 0 : i32
    %c0_i32_0 = arith.constant 0 : i32
    %c0_i32_1 = arith.constant 0 : i32
    return %c0_i32, %c0_i32_0 : i32, i32
  }
  func.func @transform_12(%arg0: i32) -> (i32, i32) {
    %c0_i32 = arith.constant 0 : i32
    %c0_i32_0 = arith.constant 0 : i32
    return %arg0, %c0_i32 : i32, i32
  }
}

</mosaic_0001>

<llo_original>
// kernel: tpu_custom_call.1
$region0: #{tpu_custom_call.1}
  #allocation0 [shape = 'u32[]', space=smem, size = 0x4, offset = 0x4, fixed_abs, tag = 'smem constant byte address 0x4 - core index']
  #allocation1 [shape = 'u32[144,128]{1,0:T(1,128)}', space=vmem, size = 0x12000, scoped, tag = 'internal scratch']
  %s0 = inlined_call_operand.vmem [shape: s32[32,1], index: 0, kind: input, shape index: {}]
  %s1 = inlined_call_operand.hbm [shape: bf16[32,64], index: 1, kind: input, shape index: {}]
  %s2 = inlined_call_operand.vmem [shape: bf16[3,64,256], index: 2, kind: input, shape index: {}]
  %s3 = inlined_call_operand.vmem [shape: f32[3,1,256], index: 3, kind: input, shape index: {}]
  %s4 = inlined_call_operand.vmem [shape: f32[3,7,128], index: 4, kind: input, shape index: {}]
  %s5 = inlined_call_operand.vmem [shape: f32[3,1,128], index: 5, kind: input, shape index: {}]
  %s6 = inlined_call_operand.vmem [shape: bf16[3,32,128], index: 6, kind: input, shape index: {}]
  %s7 = inlined_call_operand.vmem [shape: f32[3,1,128], index: 7, kind: input, shape index: {}]
  %s8 = inlined_call_operand.vmem [shape: bf16[3,96,64], index: 8, kind: input, shape index: {}]
  %s9 = inlined_call_operand.vmem [shape: f32[3,1,64], index: 9, kind: input, shape index: {}]
  %s10 = inlined_call_operand.vmem [shape: f32[1,64], index: 10, kind: input, shape index: {}]
  %s11 = inlined_call_operand.vmem [shape: f32[1,64], index: 11, kind: input, shape index: {}]
  %s12 = inlined_call_operand.hbm [shape: f32[32,64], index: 12, kind: output, shape index: {}]
  %s13 = sld [smem:[#allocation0]]
  $region62: #{tpu_custom_call.1} parent=0
    _
  %s15 = ssub.s32 1, %s13
  %s16 = scalar_select 0, %s15, %s13
  $region1: #{tpu_custom_call.1} parent=0
    #allocation2 [shape = 'u8[8192]{0}', space=vmem, size = 0x2000, scoped, tag = 'input window, operand 1, single buffered']
    #allocation3 [shape = 's32[1]{0}', space=sflag, size = 0x4, scoped, tag = 'scoped memory for tpu_custom_call.1']
    #allocation4 [shape = 's32[1]{0}', space=sflag, size = 0x4, scoped, tag = 'scoped memory for tpu_custom_call.1']
    #allocation5 [shape = 'u8[16384]{0}', space=vmem, size = 0x4000, scoped, tag = 'output window, operand 0, single buffered']
    %17 = vsyncpa [#allocation3], 0
    %18 = vsyncpa [#allocation4], 0
    // Predicated region
    $region2: #{tpu_custom_call.1} parent=1 // pred_check
      _
    $region3: #{tpu_custom_call.1} parent=1 // pred_check_branch
      %20 = sbr.rel (0) target = $region5
    $region4: #{tpu_custom_call.1} parent=1 // pred_region
      _
    $region5: #{tpu_custom_call.1} parent=1 // pred_fallthru
      _
    // Predicated region
    $region6: #{tpu_custom_call.1} parent=1 // pred_check
      _
    $region7: #{tpu_custom_call.1} parent=1 // pred_check_branch
      %22 = sbr.rel (0) target = $region9
    $region8: #{tpu_custom_call.1} parent=1 // pred_region
      %s24 = ssub.s32 256, 256
      %25 = vsyncadd [#allocation3], %s24
      %s26 = sshll.u32 [#allocation2], 4
      %s27 = int_to_ptr.vmem [resolvable:$true] %s26
      %32 = dma.hbm_to_vmem [thread:$0]  %s1, 256, %s27, [#allocation3], 64, 64, 4
    $region9: #{tpu_custom_call.1} parent=1 // pred_fallthru
      _
    // Predicated region
    $region10: #{tpu_custom_call.1} parent=1 // pred_check
      _
    $region11: #{tpu_custom_call.1} parent=1 // pred_check_branch
      %34 = sbr.rel (0) target = $region13
    $region12: #{tpu_custom_call.1} parent=1 // pred_region
      _
    $region13: #{tpu_custom_call.1} parent=1 // pred_fallthru
      _
    // Predicated region
    $region14: #{tpu_custom_call.1} parent=1 // pred_check
      _
    $region15: #{tpu_custom_call.1} parent=1 // pred_check_branch
      %36 = sbr.rel (0) target = $region17
    $region16: #{tpu_custom_call.1} parent=1 // pred_region
      _
    $region17: #{tpu_custom_call.1} parent=1 // pred_fallthru
      _
    // Predicated region
    $region18: #{tpu_custom_call.1} parent=1 // pred_check
      _
    $region19: #{tpu_custom_call.1} parent=1 // pred_check_branch
      %38 = sbr.rel (0) target = $region21
    $region20: #{tpu_custom_call.1} parent=1 // pred_region
      _
    $region21: #{tpu_custom_call.1} parent=1 // pred_fallthru
      _
    // Predicated region
    $region22: #{tpu_custom_call.1} parent=1 // pred_check
      _
    $region23: #{tpu_custom_call.1} parent=1 // pred_check_branch
      %40 = sbr.rel (0) target = $region25
    $region24: #{tpu_custom_call.1} parent=1 // pred_region
      _
    $region25: #{tpu_custom_call.1} parent=1 // pred_fallthru
      _
    // Predicated region
    $region26: #{tpu_custom_call.1} parent=1 // pred_check
      _
    $region27: #{tpu_custom_call.1} parent=1 // pred_check_branch
      %42 = sbr.rel (0) target = $region29
    $region28: #{tpu_custom_call.1} parent=1 // pred_region
      _
    $region29: #{tpu_custom_call.1} parent=1 // pred_fallthru
      _
    // Predicated region
    $region30: #{tpu_custom_call.1} parent=1 // pred_check
      _
    $region31: #{tpu_custom_call.1} parent=1 // pred_check_branch
      %44 = sbr.rel (0) target = $region33
    $region32: #{tpu_custom_call.1} parent=1 // pred_region
      _
    $region33: #{tpu_custom_call.1} parent=1 // pred_fallthru
      _
    // Predicated region
    $region34: #{tpu_custom_call.1} parent=1 // pred_check
      _
    $region35: #{tpu_custom_call.1} parent=1 // pred_check_branch
      %46 = sbr.rel (0) target = $region37
    $region36: #{tpu_custom_call.1} parent=1 // pred_region
      _
    $region37: #{tpu_custom_call.1} parent=1 // pred_fallthru
      _
    // Predicated region
    $region38: #{tpu_custom_call.1} parent=1 // pred_check
      _
    $region39: #{tpu_custom_call.1} parent=1 // pred_check_branch
      %48 = sbr.rel (0) target = $region41
    $region40: #{tpu_custom_call.1} parent=1 // pred_region
      _
    $region41: #{tpu_custom_call.1} parent=1 // pred_fallthru
      _
    // Predicated region
    $region42: #{tpu_custom_call.1} parent=1 // pred_check
      _
    $region43: #{tpu_custom_call.1} parent=1 // pred_check_branch
      %50 = sbr.rel (0) target = $region45
    $region44: #{tpu_custom_call.1} parent=1 // pred_region
      _
    $region45: #{tpu_custom_call.1} parent=1 // pred_fallthru
      _
    // Predicated region
    $region46: #{tpu_custom_call.1} parent=1 // pred_check
      _
    $region47: #{tpu_custom_call.1} parent=1 // pred_check_branch
      %52 = sbr.rel (0) target = $region49
    $region48: #{tpu_custom_call.1} parent=1 // pred_region
      _
    $region49: #{tpu_custom_call.1} parent=1 // pred_fallthru
      _
    // Predicated region
    $region50: #{tpu_custom_call.1} parent=1 // pred_check
      _
    $region51: #{tpu_custom_call.1} parent=1 // pred_check_branch
      %54 = sbr.rel (0) target = $region53
    $region52: #{tpu_custom_call.1} parent=1 // pred_region
      %55 = dma.done [#allocation3], 256
    $region53: #{tpu_custom_call.1} parent=1 // pred_fallthru
      _
    %v57 = vlaneseq
    %v58 = vshrl.u32 %v57, 7
    %v59 = vadd.s32 %v58, 8
    %v60 = vadd.s32 %v58, 16
    %v61 = vadd.s32 %v58, 24
    %vm62 = vcmp.lt.s32.totalorder %v58, 0
    %v63 = vsub.s32 0, %v58
    %v64 = vsel %vm62, %v63, %v58
    %v65 = vshrl.u32 %v64, 4
    %v66 = vand.u32 %v64, 15
    %v67 = vsub.s32 0, %v66
    %v68 = vsel %vm62, %v67, %v66
    %vm69 = vcmp.lt.s32.totalorder %v59, 0
    %v70 = vsub.s32 0, %v59
    %v71 = vsel %vm69, %v70, %v59
    %v72 = vshrl.u32 %v71, 4
    %v73 = vand.u32 %v71, 15
    %v74 = vsub.s32 0, %v73
    %v75 = vsel %vm69, %v74, %v73
    %vm76 = vcmp.lt.s32.totalorder %v60, 0
    %v77 = vsub.s32 0, %v60
    %v78 = vsel %vm76, %v77, %v60
    %v79 = vshrl.u32 %v78, 4
    %v80 = vand.u32 %v78, 15
    %v81 = vsub.s32 0, %v80
    %v82 = vsel %vm76, %v81, %v80
    %vm83 = vcmp.lt.s32.totalorder %v61, 0
    %v84 = vsub.s32 0, %v61
    %v85 = vsel %vm83, %v84, %v61
    %v86 = vshrl.u32 %v85, 4
    %v87 = vand.u32 %v85, 15
    %v88 = vsub.s32 0, %v87
    %v89 = vsel %vm83, %v88, %v87
    %vm90 = vcmp.ne.s32.totalorder %v68, 0
    %vm91 = vcmp.ne.s32.totalorder %v75, 0
    %vm92 = vcmp.ne.s32.totalorder %v82, 0
    %vm93 = vcmp.ne.s32.totalorder %v89, 0
    %vm94 = vcmp.lt.s32.totalorder %v68, 0
    %vm95 = vcmp.lt.s32.totalorder %v75, 0
    %vm96 = vcmp.lt.s32.totalorder %v82, 0
    %vm97 = vcmp.lt.s32.totalorder %v89, 0
    %vm98 = vmand %vm94, %vm90
    %vm99 = vmand %vm95, %vm91
    %vm100 = vmand %vm96, %vm92
    %vm101 = vmand %vm97, %vm93
    %v102 = vadd.s32 %v68, 16
    %v103 = vadd.s32 %v75, 16
    %v104 = vadd.s32 %v82, 16
    %v105 = vadd.s32 %v89, 16
    %v106 = vsel %vm98, %v102, %v68
    %v107 = vsel %vm99, %v103, %v75
    %v108 = vsel %vm100, %v104, %v82
    %v109 = vsel %vm101, %v105, %v89
    %vm110 = vcmp.ge.s32.totalorder %v106, 3
    %vm111 = vcmp.ge.s32.totalorder %v107, 3
    %vm112 = vcmp.ge.s32.totalorder %v108, 3
    %vm113 = vcmp.ge.s32.totalorder %v109, 3
    %vm114 = vcmp.lt.s32.totalorder %v106, 19
    %vm115 = vcmp.lt.s32.totalorder %v107, 19
    %vm116 = vcmp.lt.s32.totalorder %v108, 19
    %vm117 = vcmp.lt.s32.totalorder %v109, 19
    %vm118 = vmand %vm110, %vm114
    %vm119 = vmand %vm111, %vm115
    %vm120 = vmand %vm112, %vm116
    %vm121 = vmand %vm113, %vm117
    %vm122 = vcmp.ge.s32.totalorder %v106, 2
    %vm123 = vcmp.ge.s32.totalorder %v107, 2
    %vm124 = vcmp.ge.s32.totalorder %v108, 2
    %vm125 = vcmp.ge.s32.totalorder %v109, 2
    %vm126 = vcmp.lt.s32.totalorder %v106, 18
    %vm127 = vcmp.lt.s32.totalorder %v107, 18
    %vm128 = vcmp.lt.s32.totalorder %v108, 18
    %vm129 = vcmp.lt.s32.totalorder %v109, 18
    %vm130 = vmand %vm122, %vm126
    %vm131 = vmand %vm123, %vm127
    %vm132 = vmand %vm124, %vm128
    %vm133 = vmand %vm125, %vm129
    %vm134 = vcmp.ge.s32.totalorder %v106, 1
    %vm135 = vcmp.ge.s32.totalorder %v107, 1
    %vm136 = vcmp.ge.s32.totalorder %v108, 1
    %vm137 = vcmp.ge.s32.totalorder %v109, 1
    %vm138 = vcmp.lt.s32.totalorder %v106, 17
    %vm139 = vcmp.lt.s32.totalorder %v107, 17
    %vm140 = vcmp.lt.s32.totalorder %v108, 17
    %vm141 = vcmp.lt.s32.totalorder %v109, 17
    %vm142 = vmand %vm134, %vm138
    %vm143 = vmand %vm135, %vm139
    %vm144 = vmand %vm136, %vm140
    %vm145 = vmand %vm137, %vm141
    %vm146 = vcmp.ge.s32.totalorder %v106, 4294967295
    %vm147 = vcmp.ge.s32.totalorder %v107, 4294967295
    %vm148 = vcmp.ge.s32.totalorder %v108, 4294967295
    %vm149 = vcmp.ge.s32.totalorder %v109, 4294967295
    %vm150 = vcmp.lt.s32.totalorder %v106, 15
    %vm151 = vcmp.lt.s32.totalorder %v107, 15
    %vm152 = vcmp.lt.s32.totalorder %v108, 15
    %vm153 = vcmp.lt.s32.totalorder %v109, 15
    %vm154 = vmand %vm146, %vm150
    %vm155 = vmand %vm147, %vm151
    %vm156 = vmand %vm148, %vm152
    %vm157 = vmand %vm149, %vm153
    %vm158 = vcmp.ge.s32.totalorder %v106, 4294967294
    %vm159 = vcmp.ge.s32.totalorder %v107, 4294967294
    %vm160 = vcmp.ge.s32.totalorder %v108, 4294967294
    %vm161 = vcmp.ge.s32.totalorder %v109, 4294967294
    %vm162 = vcmp.lt.s32.totalorder %v106, 14
    %vm163 = vcmp.lt.s32.totalorder %v107, 14
    %vm164 = vcmp.lt.s32.totalorder %v108, 14
    %vm165 = vcmp.lt.s32.totalorder %v109, 14
    %vm166 = vmand %vm158, %vm162
    %vm167 = vmand %vm159, %vm163
    %vm168 = vmand %vm160, %vm164
    %vm169 = vmand %vm161, %vm165
    %vm170 = vcmp.ge.s32.totalorder %v106, 4294967293
    %vm171 = vcmp.ge.s32.totalorder %v107, 4294967293
    %vm172 = vcmp.ge.s32.totalorder %v108, 4294967293
    %vm173 = vcmp.ge.s32.totalorder %v109, 4294967293
    %vm174 = vcmp.lt.s32.totalorder %v106, 13
    %vm175 = vcmp.lt.s32.totalorder %v107, 13
    %vm176 = vcmp.lt.s32.totalorder %v108, 13
    %vm177 = vcmp.lt.s32.totalorder %v109, 13
    %vm178 = vmand %vm170, %vm174
    %vm179 = vmand %vm171, %vm175
    %vm180 = vmand %vm172, %vm176
    %vm181 = vmand %vm173, %vm177
    %v182 = vld [vmem:[%s0] sm:$0xff]
    %v183 = vld [vmem:[%s0 + $0x8] sm:$0xff]
    %v184 = vld [vmem:[%s0 + $0x10] sm:$0xff]
    %v185 = vld [vmem:[%s0 + $0x18] sm:$0xff]
    %v186 = vlaneseq
    %v187 = vand.u32 %v186, 127
    %188 = vset.pattern.permute.xlu0 0
    %189 = vperm.xlu0 %188, %v182
    %v190 = vpop.permute.xlu0 %189
    %191 = vset.pattern.permute.xlu0 0
    %192 = vperm.xlu0 %191, %v183
    %v193 = vpop.permute.xlu0 %192
    %194 = vset.pattern.permute.xlu0 0
    %195 = vperm.xlu0 %194, %v184
    %v196 = vpop.permute.xlu0 %195
    %197 = vset.pattern.permute.xlu0 0
    %198 = vperm.xlu0 %197, %v185
    %v199 = vpop.permute.xlu0 %198
    %vm200 = vcmp.eq.s32.totalorder %v190, %v187
    %vm201 = vcmp.eq.s32.totalorder %v193, %v187
    %vm202 = vcmp.eq.s32.totalorder %v196, %v187
    %vm203 = vcmp.eq.s32.totalorder %v199, %v187
    %v204 = vsel %vm200, 1.0, 0.0
    %v205 = vsel %vm201, 1.0, 0.0
    %v206 = vsel %vm202, 1.0, 0.0
    %v207 = vsel %vm203, 1.0, 0.0
    %v208 = vpack.c.bf16 %v205, %v204
    %v209 = vpack.c.bf16 %v207, %v206
    %v210 = vld [vmem:[#allocation2] sm:$0xf]
    %v211 = vld [vmem:[#allocation2 + $0x4] sm:$0xf]
    %v212 = vld [vmem:[#allocation2 + $0x8] sm:$0xf]
    %v213 = vld [vmem:[#allocation2 + $0xc] sm:$0xf]
    %v218 = vunpack.c.l.b16 %v210
    %v219 = vunpack.c.l.b16 %v211
    %v220 = vunpack.c.l.b16 %v212
    %v221 = vunpack.c.l.b16 %v213
    %v222 = vpack.c.b16 %v219, %v218
    %v223 = vpack.c.b16 %v221, %v220
    %vm226 = vcmask 261120
    %v228 = vsel %vm226, %v208, 0
    %v231 = vsel %vm226, %v209, 0
    %233 = vmatprep.subr.bf16.mxu0 0
    %234 = vmatpush1.bf16.msra.mxu0 0
    %235 = vmatprep.subr.bf16.mxu0 0
    %236 = vmatpush1.bf16.msra.mxu0 0
    %237 = vmatprep.subr.bf16.mxu0 0
    %238 = vmatpush1.bf16.msra.mxu0 0
    %239 = vmatprep.subr.bf16.mxu0 0
    %240 = vmatpush1.bf16.msra.mxu0 0
    %241 = vmatprep.subr.bf16.mxu0 0
    %242 = vmatpush1.bf16.msra.mxu0 0
    %243 = vmatprep.subr.bf16.mxu0 0
    %244 = vmatpush1.bf16.msra.mxu0 0
    %245 = vmatprep.subr.bf16.mxu0 0
    %246 = vmatpush1.bf16.msra.mxu0 %v223
    %247 = vmatprep.subr.bf16.mxu0 0
    %248 = vmatpush1.bf16.msra.mxu0 %v222
    %249 = vmatprep.subr.bf16.mxu0 0
    %250 = vmatpush2.bf16.msra.mxu0 0
    %251 = vmatprep.subr.bf16.mxu0 0
    %252 = vmatpush2.bf16.msra.mxu0 0
    %253 = vmatprep.subr.bf16.mxu0 0
    %254 = vmatpush2.bf16.msra.mxu0 0
    %255 = vmatprep.subr.bf16.mxu0 0
    %256 = vmatpush2.bf16.msra.mxu0 0
    %257 = vmatprep.subr.bf16.mxu0 0
    %258 = vmatpush2.bf16.msra.mxu0 0
    %259 = vmatprep.subr.bf16.mxu0 0
    %260 = vmatpush2.bf16.msra.mxu0 0
    %261 = vmatprep.subr.bf16.mxu0 0
    %262 = vmatpush2.bf16.msra.mxu0 0
    %263 = vmatprep.subr.bf16.mxu0 0
    %264 = vmatpush2.bf16.msra.mxu0 0
    %265 = vmatprep.mubr.bf16.mxu0 0
    %266 = vmatmul.mubr.bf16.gmra.mxu0 %v228
    %v267 = vpop.f32.mrf.mxu0
    %v268 = vadd.f32 0.0, %v267
    %v269 = vpop.f32.mrf.mxu0
    %v270 = vpop.f32.mrf.mxu0
    %v271 = vadd.f32 0.0, %v270
    %v272 = vpop.f32.mrf.mxu0
    %273 = vmatprep.mubr.bf16.mxu0 0
    %274 = vmatmul.mubr.bf16.gmra.mxu0 %v231
    %v275 = vpop.f32.mrf.mxu0
    %v276 = vadd.f32 0.0, %v275
    %v277 = vpop.f32.mrf.mxu0
    %v278 = vpop.f32.mrf.mxu0
    %v279 = vadd.f32 0.0, %v278
    %v280 = vpop.f32.mrf.mxu0
    %281 = vdwg.mxu0
    %v282 = vpack.c.bf16 %v271, %v268
    %v283 = vpack.c.bf16 %v279, %v276
    %v284 = vld [vmem:[%s2] sm:$0xff]
    %v285 = vld [vmem:[%s2 + $0x8] sm:$0xff]
    %v286 = vld [vmem:[%s2 + $0x10] sm:$0xff]
    %v287 = vld [vmem:[%s2 + $0x18] sm:$0xff]
    %v288 = vld [vmem:[%s2 + $0x20] sm:$0xff]
    %v289 = vld [vmem:[%s2 + $0x28] sm:$0xff]
    %v290 = vld [vmem:[%s2 + $0x30] sm:$0xff]
    %v291 = vld [vmem:[%s2 + $0x38] sm:$0xff]
    %v292 = vld [vmem:[%s3] sm:$0x3]
    %v293 = vld [vmem:[%s4] sm:$0x7f]
    %v294 = vld [vmem:[%s5] sm:$0x1]
    %v295 = vld [vmem:[%s6] sm:$0xf]
    %v296 = vld [vmem:[%s6 + $0x4] sm:$0xf]
    %v297 = vld [vmem:[%s6 + $0x8] sm:$0xf]
    %v298 = vld [vmem:[%s6 + $0xc] sm:$0xf]
    %v299 = vld [vmem:[%s7] sm:$0x1]
    %v300 = vld [vmem:[%s8] sm:$0xf]
    %v301 = vld [vmem:[%s8 + $0x4] sm:$0xf]
    %v302 = vld [vmem:[%s8 + $0x8] sm:$0xf]
    %v303 = vld [vmem:[%s8 + $0xc] sm:$0xf]
    %v304 = vld [vmem:[%s8 + $0x10] sm:$0xf]
    %v305 = vld [vmem:[%s8 + $0x14] sm:$0xf]
    %v306 = vld [vmem:[%s8 + $0x18] sm:$0xf]
    %v307 = vld [vmem:[%s8 + $0x1c] sm:$0xf]
    %v308 = vld [vmem:[%s8 + $0x20] sm:$0xf]
    %v309 = vld [vmem:[%s8 + $0x24] sm:$0xf]
    %v310 = vld [vmem:[%s8 + $0x28] sm:$0xf]
    %v311 = vld [vmem:[%s8 + $0x2c] sm:$0xf]
    %v312 = vld [vmem:[%s9] sm:$0x1]
    %v314 = vlaneseq
    %v315 = vshrl.u32 %v314, 7
    %v316 = vsub.s32 0, %v315
    %v317 = vrot.slane %v292, %v316
    %v318 = vlaneseq
    %v319 = vshrl.u32 %v318, 7
    %v320 = vsub.s32 1, %v319
    %v321 = vrot.slane %v292, %v320
    %v332 = vunpack.c.l.b16 %v284
    %v333 = vunpack.c.h.b16 %v284
    %v334 = vunpack.c.l.b16 %v285
    %v335 = vunpack.c.h.b16 %v285
    %v336 = vunpack.c.l.b16 %v286
    %v337 = vunpack.c.h.b16 %v286
    %v338 = vunpack.c.l.b16 %v287
    %v339 = vunpack.c.h.b16 %v287
    %v340 = vunpack.c.l.b16 %v288
    %v341 = vunpack.c.h.b16 %v288
    %v342 = vunpack.c.l.b16 %v289
    %v343 = vunpack.c.h.b16 %v289
    %v344 = vunpack.c.l.b16 %v290
    %v345 = vunpack.c.h.b16 %v290
    %v346 = vunpack.c.l.b16 %v291
    %v347 = vunpack.c.h.b16 %v291
    %v348 = vpack.c.b16 %v334, %v332
    %v349 = vpack.c.b16 %v335, %v333
    %v350 = vpack.c.b16 %v338, %v336
    %v351 = vpack.c.b16 %v339, %v337
    %v352 = vpack.c.b16 %v342, %v340
    %v353 = vpack.c.b16 %v343, %v341
    %v354 = vpack.c.b16 %v346, %v344
    %v355 = vpack.c.b16 %v347, %v345
    %vm364 = vcmask 523264
    %v366 = vsel %vm364, %v282, 0
    %v369 = vsel %vm364, %v283, 0
    %371 = vmatprep.subr.bf16.mxu0 0
    %372 = vmatpush1.bf16.msra.mxu0 0
    %373 = vmatprep.subr.bf16.mxu0 0
    %374 = vmatpush1.bf16.msra.mxu0 0
    %375 = vmatprep.subr.bf16.mxu0 0
    %376 = vmatpush1.bf16.msra.mxu0 0
    %377 = vmatprep.subr.bf16.mxu0 0
    %378 = vmatpush1.bf16.msra.mxu0 0
    %379 = vmatprep.subr.bf16.mxu0 %v355
    %380 = vmatpush1.bf16.msra.mxu0 %v354
    %381 = vmatprep.subr.bf16.mxu0 %v353
    %382 = vmatpush1.bf16.msra.mxu0 %v352
    %383 = vmatprep.subr.bf16.mxu0 %v351
    %384 = vmatpush1.bf16.msra.mxu0 %v350
    %385 = vmatprep.subr.bf16.mxu0 %v349
    %386 = vmatpush1.bf16.msra.mxu0 %v348
    %387 = vmatprep.subr.bf16.mxu0 0
    %388 = vmatpush2.bf16.msra.mxu0 0
    %389 = vmatprep.subr.bf16.mxu0 0
    %390 = vmatpush2.bf16.msra.mxu0 0
    %391 = vmatprep.subr.bf16.mxu0 0
    %392 = vmatpush2.bf16.msra.mxu0 0
    %393 = vmatprep.subr.bf16.mxu0 0
    %394 = vmatpush2.bf16.msra.mxu0 0
    %395 = vmatprep.subr.bf16.mxu0 0
    %396 = vmatpush2.bf16.msra.mxu0 0
    %397 = vmatprep.subr.bf16.mxu0 0
    %398 = vmatpush2.bf16.msra.mxu0 0
    %399 = vmatprep.subr.bf16.mxu0 0
    %400 = vmatpush2.bf16.msra.mxu0 0
    %401 = vmatprep.subr.bf16.mxu0 0
    %402 = vmatpush2.bf16.msra.mxu0 0
    %403 = vmatprep.mubr.bf16.mxu0 0
    %404 = vmatmul.mubr.bf16.gmra.mxu0 %v366
    %v405 = vpop.f32.mrf.mxu0
    %v406 = vadd.f32 %v317, %v405
    %v407 = vpop.f32.mrf.mxu0
    %v408 = vadd.f32 %v321, %v407
    %v409 = vpop.f32.mrf.mxu0
    %v410 = vadd.f32 %v317, %v409
    %v411 = vpop.f32.mrf.mxu0
    %v412 = vadd.f32 %v321, %v411
    %413 = vmatprep.mubr.bf16.mxu0 0
    %414 = vmatmul.mubr.bf16.gmra.mxu0 %v369
    %v415 = vpop.f32.mrf.mxu0
    %v416 = vadd.f32 %v317, %v415
    %v417 = vpop.f32.mrf.mxu0
    %v418 = vadd.f32 %v321, %v417
    %v419 = vpop.f32.mrf.mxu0
    %v420 = vadd.f32 %v317, %v419
    %v421 = vpop.f32.mrf.mxu0
    %v422 = vadd.f32 %v321, %v421
    %423 = vdwg.mxu0
    %v424 = vlaneseq
    %v425 = vshrl.u32 %v424, 7
    %v426 = vsub.s32 3, %v425
    %v427 = vrot.slane %v293, %v426
    %v428 = vmul.f32 %v408, %v427
    %v429 = vmul.f32 %v412, %v427
    %v430 = vmul.f32 %v418, %v427
    %v431 = vmul.f32 %v422, %v427
    %v433 = vlaneseq
    %v434 = vshrl.u32 %v433, 7
    %v435 = vsub.s32 0, %v434
    %v436 = vrot.slane %v294, %v435
    %v438 = vadd.f32 %v428, %v436
    %v439 = vadd.f32 %v429, %v436
    %v440 = vadd.f32 %v430, %v436
    %v441 = vadd.f32 %v431, %v436
    %v442 = vrot.slane %v408, 5
    %v443 = vrot.slane %v412, 5
    %v444 = vrot.slane %v418, 5
    %v445 = vrot.slane %v422, 5
    %vm446 = vcmp.lt.s32.totalorder %v58, 3
    %v447 = vsel %vm446, %v444, %v445
    %v448 = vsel %vm446, %v443, %v444
    %v449 = vsel %vm446, %v442, %v443
    %v450 = vsel %vm446, %v445, %v442
    %v451 = vsel %vm118, 1, 0
    %v452 = vsel %vm119, 1, 0
    %v453 = vsel %vm120, 1, 0
    %v454 = vsel %vm121, 1, 0
    %vm455 = vcmp.eq.s32.totalorder %v451, 1
    %vm456 = vcmp.eq.s32.totalorder %v452, 1
    %vm457 = vcmp.eq.s32.totalorder %v453, 1
    %vm458 = vcmp.eq.s32.totalorder %v454, 1
    %v459 = vsel %vm455, %v450, 0.0
    %v460 = vsel %vm456, %v449, 0.0
    %v461 = vsel %vm457, %v448, 0.0
    %v462 = vsel %vm458, %v447, 0.0
    %v463 = vlaneseq
    %v464 = vshrl.u32 %v463, 7
    %v465 = vsub.s32 0, %v464
    %v466 = vrot.slane %v293, %v465
    %v467 = vmul.f32 %v459, %v466
    %v468 = vmul.f32 %v460, %v466
    %v469 = vmul.f32 %v461, %v466
    %v470 = vmul.f32 %v462, %v466
    %v471 = vadd.f32 %v438, %v467
    %v472 = vadd.f32 %v439, %v468
    %v473 = vadd.f32 %v440, %v469
    %v474 = vadd.f32 %v441, %v470
    %v475 = vrot.slane %v408, 6
    %v476 = vrot.slane %v412, 6
    %v477 = vrot.slane %v418, 6
    %v478 = vrot.slane %v422, 6
    %vm479 = vcmp.lt.s32.totalorder %v58, 2
    %v480 = vsel %vm479, %v477, %v478
    %v481 = vsel %vm479, %v476, %v477
    %v482 = vsel %vm479, %v475, %v476
    %v483 = vsel %vm479, %v478, %v475
    %v484 = vsel %vm130, 1, 0
    %v485 = vsel %vm131, 1, 0
    %v486 = vsel %vm132, 1, 0
    %v487 = vsel %vm133, 1, 0
    %vm488 = vcmp.eq.s32.totalorder %v484, 1
    %vm489 = vcmp.eq.s32.totalorder %v485, 1
    %vm490 = vcmp.eq.s32.totalorder %v486, 1
    %vm491 = vcmp.eq.s32.totalorder %v487, 1
    %v492 = vsel %vm488, %v483, 0.0
    %v493 = vsel %vm489, %v482, 0.0
    %v494 = vsel %vm490, %v481, 0.0
    %v495 = vsel %vm491, %v480, 0.0
    %v496 = vlaneseq
    %v497 = vshrl.u32 %v496, 7
    %v498 = vsub.s32 1, %v497
    %v499 = vrot.slane %v293, %v498
    %v500 = vmul.f32 %v492, %v499
    %v501 = vmul.f32 %v493, %v499
    %v502 = vmul.f32 %v494, %v499
    %v503 = vmul.f32 %v495, %v499
    %v504 = vadd.f32 %v471, %v500
    %v505 = vadd.f32 %v472, %v501
    %v506 = vadd.f32 %v473, %v502
    %v507 = vadd.f32 %v474, %v503
    %v508 = vrot.slane %v408, 7
    %v509 = vrot.slane %v412, 7
    %v510 = vrot.slane %v418, 7
    %v511 = vrot.slane %v422, 7
    %vm512 = vcmp.lt.s32.totalorder %v58, 1
    %v513 = vsel %vm512, %v510, %v511
    %v514 = vsel %vm512, %v509, %v510
    %v515 = vsel %vm512, %v508, %v509
    %v516 = vsel %vm512, %v511, %v508
    %v517 = vsel %vm142, 1, 0
    %v518 = vsel %vm143, 1, 0
    %v519 = vsel %vm144, 1, 0
    %v520 = vsel %vm145, 1, 0
    %vm521 = vcmp.eq.s32.totalorder %v517, 1
    %vm522 = vcmp.eq.s32.totalorder %v518, 1
    %vm523 = vcmp.eq.s32.totalorder %v519, 1
    %vm524 = vcmp.eq.s32.totalorder %v520, 1
    %v525 = vsel %vm521, %v516, 0.0
    %v526 = vsel %vm522, %v515, 0.0
    %v527 = vsel %vm523, %v514, 0.0
    %v528 = vsel %vm524, %v513, 0.0
    %v529 = vlaneseq
    %v530 = vshrl.u32 %v529, 7
    %v531 = vsub.s32 2, %v530
    %v532 = vrot.slane %v293, %v531
    %v533 = vmul.f32 %v525, %v532
    %v534 = vmul.f32 %v526, %v532
    %v535 = vmul.f32 %v527, %v532
    %v536 = vmul.f32 %v528, %v532
    %v537 = vadd.f32 %v504, %v533
    %v538 = vadd.f32 %v505, %v534
    %v539 = vadd.f32 %v506, %v535
    %v540 = vadd.f32 %v507, %v536
    %v541 = vrot.slane %v408, 1
    %v542 = vrot.slane %v412, 1
    %v543 = vrot.slane %v418, 1
    %v544 = vrot.slane %v422, 1
    %vm545 = vcmp.lt.s32.totalorder %v58, 7
    %v546 = vsel %vm545, %v543, %v544
    %v547 = vsel %vm545, %v542, %v543
    %v548 = vsel %vm545, %v541, %v542
    %v549 = vsel %vm545, %v544, %v541
    %v550 = vsel %vm154, 1, 0
    %v551 = vsel %vm155, 1, 0
    %v552 = vsel %vm156, 1, 0
    %v553 = vsel %vm157, 1, 0
    %vm554 = vcmp.eq.s32.totalorder %v550, 1
    %vm555 = vcmp.eq.s32.totalorder %v551, 1
    %vm556 = vcmp.eq.s32.totalorder %v552, 1
    %vm557 = vcmp.eq.s32.totalorder %v553, 1
    %v558 = vsel %vm554, %v548, 0.0
    %v559 = vsel %vm555, %v547, 0.0
    %v560 = vsel %vm556, %v546, 0.0
    %v561 = vsel %vm557, %v549, 0.0
    %v562 = vlaneseq
    %v563 = vshrl.u32 %v562, 7
    %v564 = vsub.s32 4, %v563
    %v565 = vrot.slane %v293, %v564
    %v566 = vmul.f32 %v558, %v565
    %v567 = vmul.f32 %v559, %v565
    %v568 = vmul.f32 %v560, %v565
    %v569 = vmul.f32 %v561, %v565
    %v570 = vadd.f32 %v537, %v566
    %v571 = vadd.f32 %v538, %v567
    %v572 = vadd.f32 %v539, %v568
    %v573 = vadd.f32 %v540, %v569
    %v574 = vrot.slane %v408, 2
    %v575 = vrot.slane %v412, 2
    %v576 = vrot.slane %v418, 2
    %v577 = vrot.slane %v422, 2
    %vm578 = vcmp.lt.s32.totalorder %v58, 6
    %v579 = vsel %vm578, %v576, %v577
    %v580 = vsel %vm578, %v575, %v576
    %v581 = vsel %vm578, %v574, %v575
    %v582 = vsel %vm578, %v577, %v574
    %v583 = vsel %vm166, 1, 0
    %v584 = vsel %vm167, 1, 0
    %v585 = vsel %vm168, 1, 0
    %v586 = vsel %vm169, 1, 0
    %vm587 = vcmp.eq.s32.totalorder %v583, 1
    %vm588 = vcmp.eq.s32.totalorder %v584, 1
    %vm589 = vcmp.eq.s32.totalorder %v585, 1
    %vm590 = vcmp.eq.s32.totalorder %v586, 1
    %v591 = vsel %vm587, %v581, 0.0
    %v592 = vsel %vm588, %v580, 0.0
    %v593 = vsel %vm589, %v579, 0.0
    %v594 = vsel %vm590, %v582, 0.0
    %v595 = vlaneseq
    %v596 = vshrl.u32 %v595, 7
    %v597 = vsub.s32 5, %v596
    %v598 = vrot.slane %v293, %v597
    %v599 = vmul.f32 %v591, %v598
    %v600 = vmul.f32 %v592, %v598
    %v601 = vmul.f32 %v593, %v598
    %v602 = vmul.f32 %v594, %v598
    %v603 = vadd.f32 %v570, %v599
    %v604 = vadd.f32 %v571, %v600
    %v605 = vadd.f32 %v572, %v601
    %v606 = vadd.f32 %v573, %v602
    %v607 = vrot.slane %v408, 3
    %v608 = vrot.slane %v412, 3
    %v609 = vrot.slane %v418, 3
    %v610 = vrot.slane %v422, 3
    %vm611 = vcmp.lt.s32.totalorder %v58, 5
    %v612 = vsel %vm611, %v609, %v610
    %v613 = vsel %vm611, %v608, %v609
    %v614 = vsel %vm611, %v607, %v608
    %v615 = vsel %vm611, %v610, %v607
    %v616 = vsel %vm178, 1, 0
    %v617 = vsel %vm179, 1, 0
    %v618 = vsel %vm180, 1, 0
    %v619 = vsel %vm181, 1, 0
    %vm620 = vcmp.eq.s32.totalorder %v616, 1
    %vm621 = vcmp.eq.s32.totalorder %v617, 1
    %vm622 = vcmp.eq.s32.totalorder %v618, 1
    %vm623 = vcmp.eq.s32.totalorder %v619, 1
    %v624 = vsel %vm620, %v614, 0.0
    %v625 = vsel %vm621, %v613, 0.0
    %v626 = vsel %vm622, %v612, 0.0
    %v627 = vsel %vm623, %v615, 0.0
    %v628 = vlaneseq
    %v629 = vshrl.u32 %v628, 7
    %v630 = vsub.s32 6, %v629
    %v631 = vrot.slane %v293, %v630
    %v632 = vmul.f32 %v624, %v631
    %v633 = vmul.f32 %v625, %v631
    %v634 = vmul.f32 %v626, %v631
    %v635 = vmul.f32 %v627, %v631
    %v636 = vadd.f32 %v603, %v632
    %v637 = vadd.f32 %v604, %v633
    %v638 = vadd.f32 %v605, %v634
    %v639 = vadd.f32 %v606, %v635
    %v640 = vmul.f32 %v406, %v636
    %v641 = vmul.f32 %v410, %v637
    %v642 = vmul.f32 %v416, %v638
    %v643 = vmul.f32 %v420, %v639
    %v644 = vpack.c.bf16 %v641, %v640
    %v645 = vpack.c.bf16 %v643, %v642
    %v647 = vlaneseq
    %v648 = vshrl.u32 %v647, 7
    %v649 = vsub.s32 0, %v648
    %v650 = vrot.slane %v299, %v649
    %v656 = vunpack.c.l.b16 %v295
    %v657 = vunpack.c.l.b16 %v296
    %v658 = vunpack.c.l.b16 %v297
    %v659 = vunpack.c.l.b16 %v298
    %v660 = vpack.c.b16 %v657, %v656
    %v661 = vpack.c.b16 %v659, %v658
    %v665 = vsel %vm226, %v644, 0
    %v668 = vsel %vm226, %v645, 0
    %670 = vmatprep.subr.bf16.mxu0 0
    %671 = vmatpush1.bf16.msra.mxu0 0
    %672 = vmatprep.subr.bf16.mxu0 0
    %673 = vmatpush1.bf16.msra.mxu0 0
    %674 = vmatprep.subr.bf16.mxu0 0
    %675 = vmatpush1.bf16.msra.mxu0 0
    %676 = vmatprep.subr.bf16.mxu0 0
    %677 = vmatpush1.bf16.msra.mxu0 0
    %678 = vmatprep.subr.bf16.mxu0 0
    %679 = vmatpush1.bf16.msra.mxu0 0
    %680 = vmatprep.subr.bf16.mxu0 0
    %681 = vmatpush1.bf16.msra.mxu0 0
    %682 = vmatprep.subr.bf16.mxu0 0
    %683 = vmatpush1.bf16.msra.mxu0 %v661
    %684 = vmatprep.subr.bf16.mxu0 0
    %685 = vmatpush1.bf16.msra.mxu0 %v660
    %686 = vmatprep.subr.bf16.mxu0 0
    %687 = vmatpush2.bf16.msra.mxu0 0
    %688 = vmatprep.subr.bf16.mxu0 0
    %689 = vmatpush2.bf16.msra.mxu0 0
    %690 = vmatprep.subr.bf16.mxu0 0
    %691 = vmatpush2.bf16.msra.mxu0 0
    %692 = vmatprep.subr.bf16.mxu0 0
    %693 = vmatpush2.bf16.msra.mxu0 0
    %694 = vmatprep.subr.bf16.mxu0 0
    %695 = vmatpush2.bf16.msra.mxu0 0
    %696 = vmatprep.subr.bf16.mxu0 0
    %697 = vmatpush2.bf16.msra.mxu0 0
    %698 = vmatprep.subr.bf16.mxu0 0
    %699 = vmatpush2.bf16.msra.mxu0 0
    %700 = vmatprep.subr.bf16.mxu0 0
    %701 = vmatpush2.bf16.msra.mxu0 0
    %702 = vmatprep.mubr.bf16.mxu0 0
    %703 = vmatmul.mubr.bf16.gmra.mxu0 %v665
    %v704 = vpop.f32.mrf.mxu0
    %v705 = vadd.f32 %v650, %v704
    %v706 = vpop.f32.mrf.mxu0
    %v707 = vpop.f32.mrf.mxu0
    %v708 = vadd.f32 %v650, %v707
    %v709 = vpop.f32.mrf.mxu0
    %710 = vmatprep.mubr.bf16.mxu0 0
    %711 = vmatmul.mubr.bf16.gmra.mxu0 %v668
    %v712 = vpop.f32.mrf.mxu0
    %v713 = vadd.f32 %v650, %v712
    %v714 = vpop.f32.mrf.mxu0
    %v715 = vpop.f32.mrf.mxu0
    %v716 = vadd.f32 %v650, %v715
    %v717 = vpop.f32.mrf.mxu0
    %718 = vdwg.mxu0
    %v719 = vmul.f32 %v705, %v636
    %v720 = vmul.f32 %v708, %v637
    %v721 = vmul.f32 %v713, %v638
    %v722 = vmul.f32 %v716, %v639
    %v723 = vpack.c.bf16 %v720, %v719
    %v724 = vpack.c.bf16 %v722, %v721
    %v726 = vlaneseq
    %v727 = vshrl.u32 %v726, 7
    %v728 = vsub.s32 0, %v727
    %v729 = vrot.slane %v312, %v728
    %v743 = vunpack.c.l.b16 %v300
    %v744 = vunpack.c.l.b16 %v301
    %v745 = vunpack.c.l.b16 %v302
    %v746 = vunpack.c.l.b16 %v303
    %v747 = vunpack.c.l.b16 %v304
    %v748 = vunpack.c.l.b16 %v305
    %v749 = vunpack.c.l.b16 %v306
    %v750 = vunpack.c.l.b16 %v307
    %v751 = vunpack.c.l.b16 %v308
    %v752 = vunpack.c.l.b16 %v309
    %v753 = vunpack.c.l.b16 %v310
    %v754 = vunpack.c.l.b16 %v311
    %v755 = vpack.c.b16 %v744, %v743
    %v756 = vpack.c.b16 %v746, %v745
    %v757 = vpack.c.b16 %v748, %v747
    %v758 = vpack.c.b16 %v750, %v749
    %v759 = vpack.c.b16 %v752, %v751
    %v760 = vpack.c.b16 %v754, %v753
    %vm767 = vcmask 785408
    %v769 = vsel %vm767, %v723, 0
    %v772 = vsel %vm767, %v724, 0
    %774 = vmatprep.subr.bf16.mxu0 0
    %775 = vmatpush1.bf16.msra.mxu0 0
    %776 = vmatprep.subr.bf16.mxu0 0
    %777 = vmatpush1.bf16.msra.mxu0 0
    %778 = vmatprep.subr.bf16.mxu0 0
    %779 = vmatpush1.bf16.msra.mxu0 %v760
    %780 = vmatprep.subr.bf16.mxu0 0
    %781 = vmatpush1.bf16.msra.mxu0 %v759
    %782 = vmatprep.subr.bf16.mxu0 0
    %783 = vmatpush1.bf16.msra.mxu0 %v758
    %784 = vmatprep.subr.bf16.mxu0 0
    %785 = vmatpush1.bf16.msra.mxu0 %v757
    %786 = vmatprep.subr.bf16.mxu0 0
    %787 = vmatpush1.bf16.msra.mxu0 %v756
    %788 = vmatprep.subr.bf16.mxu0 0
    %789 = vmatpush1.bf16.msra.mxu0 %v755
    %790 = vmatprep.subr.bf16.mxu0 0
    %791 = vmatpush2.bf16.msra.mxu0 0
    %792 = vmatprep.subr.bf16.mxu0 0
    %793 = vmatpush2.bf16.msra.mxu0 0
    %794 = vmatprep.subr.bf16.mxu0 0
    %795 = vmatpush2.bf16.msra.mxu0 0
    %796 = vmatprep.subr.bf16.mxu0 0
    %797 = vmatpush2.bf16.msra.mxu0 0
    %798 = vmatprep.subr.bf16.mxu0 0
    %799 = vmatpush2.bf16.msra.mxu0 0
    %800 = vmatprep.subr.bf16.mxu0 0
    %801 = vmatpush2.bf16.msra.mxu0 0
    %802 = vmatprep.subr.bf16.mxu0 0
    %803 = vmatpush2.bf16.msra.mxu0 0
    %804 = vmatprep.subr.bf16.mxu0 0
    %805 = vmatpush2.bf16.msra.mxu0 0
    %806 = vmatprep.mubr.bf16.mxu0 0
    %807 = vmatmul.mubr.bf16.gmra.mxu0 %v769
    %v808 = vpop.f32.mrf.mxu0
    %v809 = vadd.f32 %v729, %v808
    %v810 = vpop.f32.mrf.mxu0
    %v811 = vpop.f32.mrf.mxu0
    %v812 = vadd.f32 %v729, %v811
    %v813 = vpop.f32.mrf.mxu0
    %814 = vmatprep.mubr.bf16.mxu0 0
    %815 = vmatmul.mubr.bf16.gmra.mxu0 %v772
    %v816 = vpop.f32.mrf.mxu0
    %v817 = vadd.f32 %v729, %v816
    %v818 = vpop.f32.mrf.mxu0
    %v819 = vpop.f32.mrf.mxu0
    %v820 = vadd.f32 %v729, %v819
    %v821 = vpop.f32.mrf.mxu0
    %822 = vdwg.mxu0
    %v823 = vmax.f32 %v809, 0.0
    %v824 = vmax.f32 %v812, 0.0
    %v825 = vmax.f32 %v817, 0.0
    %v826 = vmax.f32 %v820, 0.0
    %v827 = vpack.c.bf16 %v824, %v823
    %v828 = vpack.c.bf16 %v826, %v825
    %s829 = scalar_lea.vmem %s2, 64
    %v830 = vld [vmem:[%s829] sm:$0xff]
    %v831 = vld [vmem:[%s829 + $0x8] sm:$0xff]
    %v832 = vld [vmem:[%s829 + $0x10] sm:$0xff]
    %v833 = vld [vmem:[%s829 + $0x18] sm:$0xff]
    %v834 = vld [vmem:[%s829 + $0x20] sm:$0xff]
    %v835 = vld [vmem:[%s829 + $0x28] sm:$0xff]
    %v836 = vld [vmem:[%s829 + $0x30] sm:$0xff]
    %v837 = vld [vmem:[%s829 + $0x38] sm:$0xff]
    %s838 = scalar_lea.vmem %s3, 2
    %v839 = vld [vmem:[%s838] sm:$0x3]
    %s840 = scalar_lea.vmem %s4, 8
    %v841 = vld [vmem:[%s840] sm:$0x7f]
    %s842 = scalar_lea.vmem %s5, 1
    %v843 = vld [vmem:[%s842] sm:$0x1]
    %s844 = scalar_lea.vmem %s6, 16
    %v845 = vld [vmem:[%s844] sm:$0xf]
    %v846 = vld [vmem:[%s844 + $0x4] sm:$0xf]
    %v847 = vld [vmem:[%s844 + $0x8] sm:$0xf]
    %v848 = vld [vmem:[%s844 + $0xc] sm:$0xf]
    %s849 = scalar_lea.vmem %s7, 1
    %v850 = vld [vmem:[%s849] sm:$0x1]
    %s851 = scalar_lea.vmem %s8, 48
    %v852 = vld [vmem:[%s851] sm:$0xf]
    %v853 = vld [vmem:[%s851 + $0x4] sm:$0xf]
    %v854 = vld [vmem:[%s851 + $0x8] sm:$0xf]
    %v855 = vld [vmem:[%s851 + $0xc] sm:$0xf]
    %v856 = vld [vmem:[%s851 + $0x10] sm:$0xf]
    %v857 = vld [vmem:[%s851 + $0x14] sm:$0xf]
    %v858 = vld [vmem:[%s851 + $0x18] sm:$0xf]
    %v859 = vld [vmem:[%s851 + $0x1c] sm:$0xf]
    %v860 = vld [vmem:[%s851 + $0x20] sm:$0xf]
    %v861 = vld [vmem:[%s851 + $0x24] sm:$0xf]
    %v862 = vld [vmem:[%s851 + $0x28] sm:$0xf]
    %v863 = vld [vmem:[%s851 + $0x2c] sm:$0xf]
    %s864 = scalar_lea.vmem %s9, 1
    %v865 = vld [vmem:[%s864] sm:$0x1]
    %v867 = vlaneseq
    %v868 = vshrl.u32 %v867, 7
    %v869 = vsub.s32 0, %v868
    %v870 = vrot.slane %v839, %v869
    %v871 = vlaneseq
    %v872 = vshrl.u32 %v871, 7
    %v873 = vsub.s32 1, %v872
    %v874 = vrot.slane %v839, %v873
    %v885 = vunpack.c.l.b16 %v830
    %v886 = vunpack.c.h.b16 %v830
    %v887 = vunpack.c.l.b16 %v831
    %v888 = vunpack.c.h.b16 %v831
    %v889 = vunpack.c.l.b16 %v832
    %v890 = vunpack.c.h.b16 %v832
    %v891 = vunpack.c.l.b16 %v833
    %v892 = vunpack.c.h.b16 %v833
    %v893 = vunpack.c.l.b16 %v834
    %v894 = vunpack.c.h.b16 %v834
    %v895 = vunpack.c.l.b16 %v835
    %v896 = vunpack.c.h.b16 %v835
    %v897 = vunpack.c.l.b16 %v836
    %v898 = vunpack.c.h.b16 %v836
    %v899 = vunpack.c.l.b16 %v837
    %v900 = vunpack.c.h.b16 %v837
    %v901 = vpack.c.b16 %v887, %v885
    %v902 = vpack.c.b16 %v888, %v886
    %v903 = vpack.c.b16 %v891, %v889
    %v904 = vpack.c.b16 %v892, %v890
    %v905 = vpack.c.b16 %v895, %v893
    %v906 = vpack.c.b16 %v896, %v894
    %v907 = vpack.c.b16 %v899, %v897
    %v908 = vpack.c.b16 %v900, %v898
    %v918 = vsel %vm364, %v827, 0
    %v921 = vsel %vm364, %v828, 0
    %923 = vmatprep.subr.bf16.mxu0 0
    %924 = vmatpush1.bf16.msra.mxu0 0
    %925 = vmatprep.subr.bf16.mxu0 0
    %926 = vmatpush1.bf16.msra.mxu0 0
    %927 = vmatprep.subr.bf16.mxu0 0
    %928 = vmatpush1.bf16.msra.mxu0 0
    %929 = vmatprep.subr.bf16.mxu0 0
    %930 = vmatpush1.bf16.msra.mxu0 0
    %931 = vmatprep.subr.bf16.mxu0 %v908
    %932 = vmatpush1.bf16.msra.mxu0 %v907
    %933 = vmatprep.subr.bf16.mxu0 %v906
    %934 = vmatpush1.bf16.msra.mxu0 %v905
    %935 = vmatprep.subr.bf16.mxu0 %v904
    %936 = vmatpush1.bf16.msra.mxu0 %v903
    %937 = vmatprep.subr.bf16.mxu0 %v902
    %938 = vmatpush1.bf16.msra.mxu0 %v901
    %939 = vmatprep.subr.bf16.mxu0 0
    %940 = vmatpush2.bf16.msra.mxu0 0
    %941 = vmatprep.subr.bf16.mxu0 0
    %942 = vmatpush2.bf16.msra.mxu0 0
    %943 = vmatprep.subr.bf16.mxu0 0
    %944 = vmatpush2.bf16.msra.mxu0 0
    %945 = vmatprep.subr.bf16.mxu0 0
    %946 = vmatpush2.bf16.msra.mxu0 0
    %947 = vmatprep.subr.bf16.mxu0 0
    %948 = vmatpush2.bf16.msra.mxu0 0
    %949 = vmatprep.subr.bf16.mxu0 0
    %950 = vmatpush2.bf16.msra.mxu0 0
    %951 = vmatprep.subr.bf16.mxu0 0
    %952 = vmatpush2.bf16.msra.mxu0 0
    %953 = vmatprep.subr.bf16.mxu0 0
    %954 = vmatpush2.bf16.msra.mxu0 0
    %955 = vmatprep.mubr.bf16.mxu0 0
    %956 = vmatmul.mubr.bf16.gmra.mxu0 %v918
    %v957 = vpop.f32.mrf.mxu0
    %v958 = vadd.f32 %v870, %v957
    %v959 = vpop.f32.mrf.mxu0
    %v960 = vadd.f32 %v874, %v959
    %v961 = vpop.f32.mrf.mxu0
    %v962 = vadd.f32 %v870, %v961
    %v963 = vpop.f32.mrf.mxu0
    %v964 = vadd.f32 %v874, %v963
    %965 = vmatprep.mubr.bf16.mxu0 0
    %966 = vmatmul.mubr.bf16.gmra.mxu0 %v921
    %v967 = vpop.f32.mrf.mxu0
    %v968 = vadd.f32 %v870, %v967
    %v969 = vpop.f32.mrf.mxu0
    %v970 = vadd.f32 %v874, %v969
    %v971 = vpop.f32.mrf.mxu0
    %v972 = vadd.f32 %v870, %v971
    %v973 = vpop.f32.mrf.mxu0
    %v974 = vadd.f32 %v874, %v973
    %975 = vdwg.mxu0
    %v976 = vlaneseq
    %v977 = vshrl.u32 %v976, 7
    %v978 = vsub.s32 3, %v977
    %v979 = vrot.slane %v841, %v978
    %v980 = vmul.f32 %v960, %v979
    %v981 = vmul.f32 %v964, %v979
    %v982 = vmul.f32 %v970, %v979
    %v983 = vmul.f32 %v974, %v979
    %v985 = vlaneseq
    %v986 = vshrl.u32 %v985, 7
    %v987 = vsub.s32 0, %v986
    %v988 = vrot.slane %v843, %v987
    %v990 = vadd.f32 %v980, %v988
    %v991 = vadd.f32 %v981, %v988
    %v992 = vadd.f32 %v982, %v988
    %v993 = vadd.f32 %v983, %v988
    %v994 = vrot.slane %v960, 5
    %v995 = vrot.slane %v964, 5
    %v996 = vrot.slane %v970, 5
    %v997 = vrot.slane %v974, 5
    %v998 = vsel %vm446, %v996, %v997
    %v999 = vsel %vm446, %v995, %v996
    %v1000 = vsel %vm446, %v994, %v995
    %v1001 = vsel %vm446, %v997, %v994
    %v1002 = vsel %vm455, %v1001, 0.0
    %v1003 = vsel %vm456, %v1000, 0.0
    %v1004 = vsel %vm457, %v999, 0.0
    %v1005 = vsel %vm458, %v998, 0.0
    %v1006 = vlaneseq
    %v1007 = vshrl.u32 %v1006, 7
    %v1008 = vsub.s32 0, %v1007
    %v1009 = vrot.slane %v841, %v1008
    %v1010 = vmul.f32 %v1002, %v1009
    %v1011 = vmul.f32 %v1003, %v1009
    %v1012 = vmul.f32 %v1004, %v1009
    %v1013 = vmul.f32 %v1005, %v1009
    %v1014 = vadd.f32 %v990, %v1010
    %v1015 = vadd.f32 %v991, %v1011
    %v1016 = vadd.f32 %v992, %v1012
    %v1017 = vadd.f32 %v993, %v1013
    %v1018 = vrot.slane %v960, 6
    %v1019 = vrot.slane %v964, 6
    %v1020 = vrot.slane %v970, 6
    %v1021 = vrot.slane %v974, 6
    %v1022 = vsel %vm479, %v1020, %v1021
    %v1023 = vsel %vm479, %v1019, %v1020
    %v1024 = vsel %vm479, %v1018, %v1019
    %v1025 = vsel %vm479, %v1021, %v1018
    %v1026 = vsel %vm488, %v1025, 0.0
    %v1027 = vsel %vm489, %v1024, 0.0
    %v1028 = vsel %vm490, %v1023, 0.0
    %v1029 = vsel %vm491, %v1022, 0.0
    %v1030 = vlaneseq
    %v1031 = vshrl.u32 %v1030, 7
    %v1032 = vsub.s32 1, %v1031
    %v1033 = vrot.slane %v841, %v1032
    %v1034 = vmul.f32 %v1026, %v1033
    %v1035 = vmul.f32 %v1027, %v1033
    %v1036 = vmul.f32 %v1028, %v1033
    %v1037 = vmul.f32 %v1029, %v1033
    %v1038 = vadd.f32 %v1014, %v1034
    %v1039 = vadd.f32 %v1015, %v1035
    %v1040 = vadd.f32 %v1016, %v1036
    %v1041 = vadd.f32 %v1017, %v1037
    %v1042 = vrot.slane %v960, 7
    %v1043 = vrot.slane %v964, 7
    %v1044 = vrot.slane %v970, 7
    %v1045 = vrot.slane %v974, 7
    %v1046 = vsel %vm512, %v1044, %v1045
    %v1047 = vsel %vm512, %v1043, %v1044
    %v1048 = vsel %vm512, %v1042, %v1043
    %v1049 = vsel %vm512, %v1045, %v1042
    %v1050 = vsel %vm521, %v1049, 0.0
    %v1051 = vsel %vm522, %v1048, 0.0
    %v1052 = vsel %vm523, %v1047, 0.0
    %v1053 = vsel %vm524, %v1046, 0.0
    %v1054 = vlaneseq
    %v1055 = vshrl.u32 %v1054, 7
    %v1056 = vsub.s32 2, %v1055
    %v1057 = vrot.slane %v841, %v1056
    %v1058 = vmul.f32 %v1050, %v1057
    %v1059 = vmul.f32 %v1051, %v1057
    %v1060 = vmul.f32 %v1052, %v1057
    %v1061 = vmul.f32 %v1053, %v1057
    %v1062 = vadd.f32 %v1038, %v1058
    %v1063 = vadd.f32 %v1039, %v1059
    %v1064 = vadd.f32 %v1040, %v1060
    %v1065 = vadd.f32 %v1041, %v1061
    %v1066 = vrot.slane %v960, 1
    %v1067 = vrot.slane %v964, 1
    %v1068 = vrot.slane %v970, 1
    %v1069 = vrot.slane %v974, 1
    %v1070 = vsel %vm545, %v1068, %v1069
    %v1071 = vsel %vm545, %v1067, %v1068
    %v1072 = vsel %vm545, %v1066, %v1067
    %v1073 = vsel %vm545, %v1069, %v1066
    %v1074 = vsel %vm554, %v1072, 0.0
    %v1075 = vsel %vm555, %v1071, 0.0
    %v1076 = vsel %vm556, %v1070, 0.0
    %v1077 = vsel %vm557, %v1073, 0.0
    %v1078 = vlaneseq
    %v1079 = vshrl.u32 %v1078, 7
    %v1080 = vsub.s32 4, %v1079
    %v1081 = vrot.slane %v841, %v1080
    %v1082 = vmul.f32 %v1074, %v1081
    %v1083 = vmul.f32 %v1075, %v1081
    %v1084 = vmul.f32 %v1076, %v1081
    %v1085 = vmul.f32 %v1077, %v1081
    %v1086 = vadd.f32 %v1062, %v1082
    %v1087 = vadd.f32 %v1063, %v1083
    %v1088 = vadd.f32 %v1064, %v1084
    %v1089 = vadd.f32 %v1065, %v1085
    %v1090 = vrot.slane %v960, 2
    %v1091 = vrot.slane %v964, 2
    %v1092 = vrot.slane %v970, 2
    %v1093 = vrot.slane %v974, 2
    %v1094 = vsel %vm578, %v1092, %v1093
    %v1095 = vsel %vm578, %v1091, %v1092
    %v1096 = vsel %vm578, %v1090, %v1091
    %v1097 = vsel %vm578, %v1093, %v1090
    %v1098 = vsel %vm587, %v1096, 0.0
    %v1099 = vsel %vm588, %v1095, 0.0
    %v1100 = vsel %vm589, %v1094, 0.0
    %v1101 = vsel %vm590, %v1097, 0.0
    %v1102 = vlaneseq
    %v1103 = vshrl.u32 %v1102, 7
    %v1104 = vsub.s32 5, %v1103
    %v1105 = vrot.slane %v841, %v1104
    %v1106 = vmul.f32 %v1098, %v1105
    %v1107 = vmul.f32 %v1099, %v1105
    %v1108 = vmul.f32 %v1100, %v1105
    %v1109 = vmul.f32 %v1101, %v1105
    %v1110 = vadd.f32 %v1086, %v1106
    %v1111 = vadd.f32 %v1087, %v1107
    %v1112 = vadd.f32 %v1088, %v1108
    %v1113 = vadd.f32 %v1089, %v1109
    %v1114 = vrot.slane %v960, 3
    %v1115 = vrot.slane %v964, 3
    %v1116 = vrot.slane %v970, 3
    %v1117 = vrot.slane %v974, 3
    %v1118 = vsel %vm611, %v1116, %v1117
    %v1119 = vsel %vm611, %v1115, %v1116
    %v1120 = vsel %vm611, %v1114, %v1115
    %v1121 = vsel %vm611, %v1117, %v1114
    %v1122 = vsel %vm620, %v1120, 0.0
    %v1123 = vsel %vm621, %v1119, 0.0
    %v1124 = vsel %vm622, %v1118, 0.0
    %v1125 = vsel %vm623, %v1121, 0.0
    %v1126 = vlaneseq
    %v1127 = vshrl.u32 %v1126, 7
    %v1128 = vsub.s32 6, %v1127
    %v1129 = vrot.slane %v841, %v1128
    %v1130 = vmul.f32 %v1122, %v1129
    %v1131 = vmul.f32 %v1123, %v1129
    %v1132 = vmul.f32 %v1124, %v1129
    %v1133 = vmul.f32 %v1125, %v1129
    %v1134 = vadd.f32 %v1110, %v1130
    %v1135 = vadd.f32 %v1111, %v1131
    %v1136 = vadd.f32 %v1112, %v1132
    %v1137 = vadd.f32 %v1113, %v1133
    %v1138 = vmul.f32 %v958, %v1134
    %v1139 = vmul.f32 %v962, %v1135
    %v1140 = vmul.f32 %v968, %v1136
    %v1141 = vmul.f32 %v972, %v1137
    %v1142 = vpack.c.bf16 %v1139, %v1138
    %v1143 = vpack.c.bf16 %v1141, %v1140
    %v1145 = vlaneseq
    %v1146 = vshrl.u32 %v1145, 7
    %v1147 = vsub.s32 0, %v1146
    %v1148 = vrot.slane %v850, %v1147
    %v1154 = vunpack.c.l.b16 %v845
    %v1155 = vunpack.c.l.b16 %v846
    %v1156 = vunpack.c.l.b16 %v847
    %v1157 = vunpack.c.l.b16 %v848
    %v1158 = vpack.c.b16 %v1155, %v1154
    %v1159 = vpack.c.b16 %v1157, %v1156
    %v1163 = vsel %vm226, %v1142, 0
    %v1166 = vsel %vm226, %v1143, 0
    %1168 = vmatprep.subr.bf16.mxu0 0
    %1169 = vmatpush1.bf16.msra.mxu0 0
    %1170 = vmatprep.subr.bf16.mxu0 0
    %1171 = vmatpush1.bf16.msra.mxu0 0
    %1172 = vmatprep.subr.bf16.mxu0 0
    %1173 = vmatpush1.bf16.msra.mxu0 0
    %1174 = vmatprep.subr.bf16.mxu0 0
    %1175 = vmatpush1.bf16.msra.mxu0 0
    %1176 = vmatprep.subr.bf16.mxu0 0
    %1177 = vmatpush1.bf16.msra.mxu0 0
    %1178 = vmatprep.subr.bf16.mxu0 0
    %1179 = vmatpush1.bf16.msra.mxu0 0
    %1180 = vmatprep.subr.bf16.mxu0 0
    %1181 = vmatpush1.bf16.msra.mxu0 %v1159
    %1182 = vmatprep.subr.bf16.mxu0 0
    %1183 = vmatpush1.bf16.msra.mxu0 %v1158
    %1184 = vmatprep.subr.bf16.mxu0 0
    %1185 = vmatpush2.bf16.msra.mxu0 0
    %1186 = vmatprep.subr.bf16.mxu0 0
    %1187 = vmatpush2.bf16.msra.mxu0 0
    %1188 = vmatprep.subr.bf16.mxu0 0
    %1189 = vmatpush2.bf16.msra.mxu0 0
    %1190 = vmatprep.subr.bf16.mxu0 0
    %1191 = vmatpush2.bf16.msra.mxu0 0
    %1192 = vmatprep.subr.bf16.mxu0 0
    %1193 = vmatpush2.bf16.msra.mxu0 0
    %1194 = vmatprep.subr.bf16.mxu0 0
    %1195 = vmatpush2.bf16.msra.mxu0 0
    %1196 = vmatprep.subr.bf16.mxu0 0
    %1197 = vmatpush2.bf16.msra.mxu0 0
    %1198 = vmatprep.subr.bf16.mxu0 0
    %1199 = vmatpush2.bf16.msra.mxu0 0
    %1200 = vmatprep.mubr.bf16.mxu0 0
    %1201 = vmatmul.mubr.bf16.gmra.mxu0 %v1163
    %v1202 = vpop.f32.mrf.mxu0
    %v1203 = vadd.f32 %v1148, %v1202
    %v1204 = vpop.f32.mrf.mxu0
    %v1205 = vpop.f32.mrf.mxu0
    %v1206 = vadd.f32 %v1148, %v1205
    %v1207 = vpop.f32.mrf.mxu0
    %1208 = vmatprep.mubr.bf16.mxu0 0
    %1209 = vmatmul.mubr.bf16.gmra.mxu0 %v1166
    %v1210 = vpop.f32.mrf.mxu0
    %v1211 = vadd.f32 %v1148, %v1210
    %v1212 = vpop.f32.mrf.mxu0
    %v1213 = vpop.f32.mrf.mxu0
    %v1214 = vadd.f32 %v1148, %v1213
    %v1215 = vpop.f32.mrf.mxu0
    %1216 = vdwg.mxu0
    %v1217 = vmul.f32 %v1203, %v1134
    %v1218 = vmul.f32 %v1206, %v1135
    %v1219 = vmul.f32 %v1211, %v1136
    %v1220 = vmul.f32 %v1214, %v1137
    %v1221 = vpack.c.bf16 %v1218, %v1217
    %v1222 = vpack.c.bf16 %v1220, %v1219
    %v1224 = vlaneseq
    %v1225 = vshrl.u32 %v1224, 7
    %v1226 = vsub.s32 0, %v1225
    %v1227 = vrot.slane %v865, %v1226
    %v1241 = vunpack.c.l.b16 %v852
    %v1242 = vunpack.c.l.b16 %v853
    %v1243 = vunpack.c.l.b16 %v854
    %v1244 = vunpack.c.l.b16 %v855
    %v1245 = vunpack.c.l.b16 %v856
    %v1246 = vunpack.c.l.b16 %v857
    %v1247 = vunpack.c.l.b16 %v858
    %v1248 = vunpack.c.l.b16 %v859
    %v1249 = vunpack.c.l.b16 %v860
    %v1250 = vunpack.c.l.b16 %v861
    %v1251 = vunpack.c.l.b16 %v862
    %v1252 = vunpack.c.l.b16 %v863
    %v1253 = vpack.c.b16 %v1242, %v1241
    %v1254 = vpack.c.b16 %v1244, %v1243
    %v1255 = vpack.c.b16 %v1246, %v1245
    %v1256 = vpack.c.b16 %v1248, %v1247
    %v1257 = vpack.c.b16 %v1250, %v1249
    %v1258 = vpack.c.b16 %v1252, %v1251
    %v1266 = vsel %vm767, %v1221, 0
    %v1269 = vsel %vm767, %v1222, 0
    %1271 = vmatprep.subr.bf16.mxu0 0
    %1272 = vmatpush1.bf16.msra.mxu0 0
    %1273 = vmatprep.subr.bf16.mxu0 0
    %1274 = vmatpush1.bf16.msra.mxu0 0
    %1275 = vmatprep.subr.bf16.mxu0 0
    %1276 = vmatpush1.bf16.msra.mxu0 %v1258
    %1277 = vmatprep.subr.bf16.mxu0 0
    %1278 = vmatpush1.bf16.msra.mxu0 %v1257
    %1279 = vmatprep.subr.bf16.mxu0 0
    %1280 = vmatpush1.bf16.msra.mxu0 %v1256
    %1281 = vmatprep.subr.bf16.mxu0 0
    %1282 = vmatpush1.bf16.msra.mxu0 %v1255
    %1283 = vmatprep.subr.bf16.mxu0 0
    %1284 = vmatpush1.bf16.msra.mxu0 %v1254
    %1285 = vmatprep.subr.bf16.mxu0 0
    %1286 = vmatpush1.bf16.msra.mxu0 %v1253
    %1287 = vmatprep.subr.bf16.mxu0 0
    %1288 = vmatpush2.bf16.msra.mxu0 0
    %1289 = vmatprep.subr.bf16.mxu0 0
    %1290 = vmatpush2.bf16.msra.mxu0 0
    %1291 = vmatprep.subr.bf16.mxu0 0
    %1292 = vmatpush2.bf16.msra.mxu0 0
    %1293 = vmatprep.subr.bf16.mxu0 0
    %1294 = vmatpush2.bf16.msra.mxu0 0
    %1295 = vmatprep.subr.bf16.mxu0 0
    %1296 = vmatpush2.bf16.msra.mxu0 0
    %1297 = vmatprep.subr.bf16.mxu0 0
    %1298 = vmatpush2.bf16.msra.mxu0 0
    %1299 = vmatprep.subr.bf16.mxu0 0
    %1300 = vmatpush2.bf16.msra.mxu0 0
    %1301 = vmatprep.subr.bf16.mxu0 0
    %1302 = vmatpush2.bf16.msra.mxu0 0
    %1303 = vmatprep.mubr.bf16.mxu0 0
    %1304 = vmatmul.mubr.bf16.gmra.mxu0 %v1266
    %v1305 = vpop.f32.mrf.mxu0
    %v1306 = vadd.f32 %v1227, %v1305
    %v1307 = vpop.f32.mrf.mxu0
    %v1308 = vpop.f32.mrf.mxu0
    %v1309 = vadd.f32 %v1227, %v1308
    %v1310 = vpop.f32.mrf.mxu0
    %1311 = vmatprep.mubr.bf16.mxu0 0
    %1312 = vmatmul.mubr.bf16.gmra.mxu0 %v1269
    %v1313 = vpop.f32.mrf.mxu0
    %v1314 = vadd.f32 %v1227, %v1313
    %v1315 = vpop.f32.mrf.mxu0
    %v1316 = vpop.f32.mrf.mxu0
    %v1317 = vadd.f32 %v1227, %v1316
    %v1318 = vpop.f32.mrf.mxu0
    %1319 = vdwg.mxu0
    %v1320 = vmax.f32 %v1306, 0.0
    %v1321 = vmax.f32 %v1309, 0.0
    %v1322 = vmax.f32 %v1314, 0.0
    %v1323 = vmax.f32 %v1317, 0.0
    %v1324 = vpack.c.bf16 %v1321, %v1320
    %v1325 = vpack.c.bf16 %v1323, %v1322
    %s1326 = scalar_lea.vmem %s2, 128
    %v1327 = vld [vmem:[%s1326] sm:$0xff]
    %v1328 = vld [vmem:[%s1326 + $0x8] sm:$0xff]
    %v1329 = vld [vmem:[%s1326 + $0x10] sm:$0xff]
    %v1330 = vld [vmem:[%s1326 + $0x18] sm:$0xff]
    %v1331 = vld [vmem:[%s1326 + $0x20] sm:$0xff]
    %v1332 = vld [vmem:[%s1326 + $0x28] sm:$0xff]
    %v1333 = vld [vmem:[%s1326 + $0x30] sm:$0xff]
    %v1334 = vld [vmem:[%s1326 + $0x38] sm:$0xff]
    %s1335 = scalar_lea.vmem %s3, 4
    %v1336 = vld [vmem:[%s1335] sm:$0x3]
    %s1337 = scalar_lea.vmem %s4, 16
    %v1338 = vld [vmem:[%s1337] sm:$0x7f]
    %s1339 = scalar_lea.vmem %s5, 2
    %v1340 = vld [vmem:[%s1339] sm:$0x1]
    %s1341 = scalar_lea.vmem %s6, 32
    %v1342 = vld [vmem:[%s1341] sm:$0xf]
    %v1343 = vld [vmem:[%s1341 + $0x4] sm:$0xf]
    %v1344 = vld [vmem:[%s1341 + $0x8] sm:$0xf]
    %v1345 = vld [vmem:[%s1341 + $0xc] sm:$0xf]
    %s1346 = scalar_lea.vmem %s7, 2
    %v1347 = vld [vmem:[%s1346] sm:$0x1]
    %s1348 = scalar_lea.vmem %s8, 96
    %v1349 = vld [vmem:[%s1348] sm:$0xf]
    %v1350 = vld [vmem:[%s1348 + $0x4] sm:$0xf]
    %v1351 = vld [vmem:[%s1348 + $0x8] sm:$0xf]
    %v1352 = vld [vmem:[%s1348 + $0xc] sm:$0xf]
    %v1353 = vld [vmem:[%s1348 + $0x10] sm:$0xf]
    %v1354 = vld [vmem:[%s1348 + $0x14] sm:$0xf]
    %v1355 = vld [vmem:[%s1348 + $0x18] sm:$0xf]
    %v1356 = vld [vmem:[%s1348 + $0x1c] sm:$0xf]
    %v1357 = vld [vmem:[%s1348 + $0x20] sm:$0xf]
    %v1358 = vld [vmem:[%s1348 + $0x24] sm:$0xf]
    %v1359 = vld [vmem:[%s1348 + $0x28] sm:$0xf]
    %v1360 = vld [vmem:[%s1348 + $0x2c] sm:$0xf]
    %s1361 = scalar_lea.vmem %s9, 2
    %v1362 = vld [vmem:[%s1361] sm:$0x1]
    %v1364 = vlaneseq
    %v1365 = vshrl.u32 %v1364, 7
    %v1366 = vsub.s32 0, %v1365
    %v1367 = vrot.slane %v1336, %v1366
    %v1368 = vlaneseq
    %v1369 = vshrl.u32 %v1368, 7
    %v1370 = vsub.s32 1, %v1369
    %v1371 = vrot.slane %v1336, %v1370
    %v1382 = vunpack.c.l.b16 %v1327
    %v1383 = vunpack.c.h.b16 %v1327
    %v1384 = vunpack.c.l.b16 %v1328
    %v1385 = vunpack.c.h.b16 %v1328
    %v1386 = vunpack.c.l.b16 %v1329
    %v1387 = vunpack.c.h.b16 %v1329
    %v1388 = vunpack.c.l.b16 %v1330
    %v1389 = vunpack.c.h.b16 %v1330
    %v1390 = vunpack.c.l.b16 %v1331
    %v1391 = vunpack.c.h.b16 %v1331
    %v1392 = vunpack.c.l.b16 %v1332
    %v1393 = vunpack.c.h.b16 %v1332
    %v1394 = vunpack.c.l.b16 %v1333
    %v1395 = vunpack.c.h.b16 %v1333
    %v1396 = vunpack.c.l.b16 %v1334
    %v1397 = vunpack.c.h.b16 %v1334
    %v1398 = vpack.c.b16 %v1384, %v1382
    %v1399 = vpack.c.b16 %v1385, %v1383
    %v1400 = vpack.c.b16 %v1388, %v1386
    %v1401 = vpack.c.b16 %v1389, %v1387
    %v1402 = vpack.c.b16 %v1392, %v1390
    %v1403 = vpack.c.b16 %v1393, %v1391
    %v1404 = vpack.c.b16 %v1396, %v1394
    %v1405 = vpack.c.b16 %v1397, %v1395
    %v1415 = vsel %vm364, %v1324, 0
    %v1418 = vsel %vm364, %v1325, 0
    %1420 = vmatprep.subr.bf16.mxu0 0
    %1421 = vmatpush1.bf16.msra.mxu0 0
    %1422 = vmatprep.subr.bf16.mxu0 0
    %1423 = vmatpush1.bf16.msra.mxu0 0
    %1424 = vmatprep.subr.bf16.mxu0 0
    %1425 = vmatpush1.bf16.msra.mxu0 0
    %1426 = vmatprep.subr.bf16.mxu0 0
    %1427 = vmatpush1.bf16.msra.mxu0 0
    %1428 = vmatprep.subr.bf16.mxu0 %v1405
    %1429 = vmatpush1.bf16.msra.mxu0 %v1404
    %1430 = vmatprep.subr.bf16.mxu0 %v1403
    %1431 = vmatpush1.bf16.msra.mxu0 %v1402
    %1432 = vmatprep.subr.bf16.mxu0 %v1401
    %1433 = vmatpush1.bf16.msra.mxu0 %v1400
    %1434 = vmatprep.subr.bf16.mxu0 %v1399
    %1435 = vmatpush1.bf16.msra.mxu0 %v1398
    %1436 = vmatprep.subr.bf16.mxu0 0
    %1437 = vmatpush2.bf16.msra.mxu0 0
    %1438 = vmatprep.subr.bf16.mxu0 0
    %1439 = vmatpush2.bf16.msra.mxu0 0
    %1440 = vmatprep.subr.bf16.mxu0 0
    %1441 = vmatpush2.bf16.msra.mxu0 0
    %1442 = vmatprep.subr.bf16.mxu0 0
    %1443 = vmatpush2.bf16.msra.mxu0 0
    %1444 = vmatprep.subr.bf16.mxu0 0
    %1445 = vmatpush2.bf16.msra.mxu0 0
    %1446 = vmatprep.subr.bf16.mxu0 0
    %1447 = vmatpush2.bf16.msra.mxu0 0
    %1448 = vmatprep.subr.bf16.mxu0 0
    %1449 = vmatpush2.bf16.msra.mxu0 0
    %1450 = vmatprep.subr.bf16.mxu0 0
    %1451 = vmatpush2.bf16.msra.mxu0 0
    %1452 = vmatprep.mubr.bf16.mxu0 0
    %1453 = vmatmul.mubr.bf16.gmra.mxu0 %v1415
    %v1454 = vpop.f32.mrf.mxu0
    %v1455 = vadd.f32 %v1367, %v1454
    %v1456 = vpop.f32.mrf.mxu0
    %v1457 = vadd.f32 %v1371, %v1456
    %v1458 = vpop.f32.mrf.mxu0
    %v1459 = vadd.f32 %v1367, %v1458
    %v1460 = vpop.f32.mrf.mxu0
    %v1461 = vadd.f32 %v1371, %v1460
    %1462 = vmatprep.mubr.bf16.mxu0 0
    %1463 = vmatmul.mubr.bf16.gmra.mxu0 %v1418
    %v1464 = vpop.f32.mrf.mxu0
    %v1465 = vadd.f32 %v1367, %v1464
    %v1466 = vpop.f32.mrf.mxu0
    %v1467 = vadd.f32 %v1371, %v1466
    %v1468 = vpop.f32.mrf.mxu0
    %v1469 = vadd.f32 %v1367, %v1468
    %v1470 = vpop.f32.mrf.mxu0
    %v1471 = vadd.f32 %v1371, %v1470
    %1472 = vdwg.mxu0
    %v1473 = vlaneseq
    %v1474 = vshrl.u32 %v1473, 7
    %v1475 = vsub.s32 3, %v1474
    %v1476 = vrot.slane %v1338, %v1475
    %v1477 = vmul.f32 %v1457, %v1476
    %v1478 = vmul.f32 %v1461, %v1476
    %v1479 = vmul.f32 %v1467, %v1476
    %v1480 = vmul.f32 %v1471, %v1476
    %v1482 = vlaneseq
    %v1483 = vshrl.u32 %v1482, 7
    %v1484 = vsub.s32 0, %v1483
    %v1485 = vrot.slane %v1340, %v1484
    %v1487 = vadd.f32 %v1477, %v1485
    %v1488 = vadd.f32 %v1478, %v1485
    %v1489 = vadd.f32 %v1479, %v1485
    %v1490 = vadd.f32 %v1480, %v1485
    %v1491 = vrot.slane %v1457, 5
    %v1492 = vrot.slane %v1461, 5
    %v1493 = vrot.slane %v1467, 5
    %v1494 = vrot.slane %v1471, 5
    %v1495 = vsel %vm446, %v1493, %v1494
    %v1496 = vsel %vm446, %v1492, %v1493
    %v1497 = vsel %vm446, %v1491, %v1492
    %v1498 = vsel %vm446, %v1494, %v1491
    %v1499 = vsel %vm455, %v1498, 0.0
    %v1500 = vsel %vm456, %v1497, 0.0
    %v1501 = vsel %vm457, %v1496, 0.0
    %v1502 = vsel %vm458, %v1495, 0.0
    %v1503 = vlaneseq
    %v1504 = vshrl.u32 %v1503, 7
    %v1505 = vsub.s32 0, %v1504
    %v1506 = vrot.slane %v1338, %v1505
    %v1507 = vmul.f32 %v1499, %v1506
    %v1508 = vmul.f32 %v1500, %v1506
    %v1509 = vmul.f32 %v1501, %v1506
    %v1510 = vmul.f32 %v1502, %v1506
    %v1511 = vadd.f32 %v1487, %v1507
    %v1512 = vadd.f32 %v1488, %v1508
    %v1513 = vadd.f32 %v1489, %v1509
    %v1514 = vadd.f32 %v1490, %v1510
    %v1515 = vrot.slane %v1457, 6
    %v1516 = vrot.slane %v1461, 6
    %v1517 = vrot.slane %v1467, 6
    %v1518 = vrot.slane %v1471, 6
    %v1519 = vsel %vm479, %v1517, %v1518
    %v1520 = vsel %vm479, %v1516, %v1517
    %v1521 = vsel %vm479, %v1515, %v1516
    %v1522 = vsel %vm479, %v1518, %v1515
    %v1523 = vsel %vm488, %v1522, 0.0
    %v1524 = vsel %vm489, %v1521, 0.0
    %v1525 = vsel %vm490, %v1520, 0.0
    %v1526 = vsel %vm491, %v1519, 0.0
    %v1527 = vlaneseq
    %v1528 = vshrl.u32 %v1527, 7
    %v1529 = vsub.s32 1, %v1528
    %v1530 = vrot.slane %v1338, %v1529
    %v1531 = vmul.f32 %v1523, %v1530
    %v1532 = vmul.f32 %v1524, %v1530
    %v1533 = vmul.f32 %v1525, %v1530
    %v1534 = vmul.f32 %v1526, %v1530
    %v1535 = vadd.f32 %v1511, %v1531
    %v1536 = vadd.f32 %v1512, %v1532
    %v1537 = vadd.f32 %v1513, %v1533
    %v1538 = vadd.f32 %v1514, %v1534
    %v1539 = vrot.slane %v1457, 7
    %v1540 = vrot.slane %v1461, 7
    %v1541 = vrot.slane %v1467, 7
    %v1542 = vrot.slane %v1471, 7
    %v1543 = vsel %vm512, %v1541, %v1542
    %v1544 = vsel %vm512, %v1540, %v1541
    %v1545 = vsel %vm512, %v1539, %v1540
    %v1546 = vsel %vm512, %v1542, %v1539
    %v1547 = vsel %vm521, %v1546, 0.0
    %v1548 = vsel %vm522, %v1545, 0.0
    %v1549 = vsel %vm523, %v1544, 0.0
    %v1550 = vsel %vm524, %v1543, 0.0
    %v1551 = vlaneseq
    %v1552 = vshrl.u32 %v1551, 7
    %v1553 = vsub.s32 2, %v1552
    %v1554 = vrot.slane %v1338, %v1553
    %v1555 = vmul.f32 %v1547, %v1554
    %v1556 = vmul.f32 %v1548, %v1554
    %v1557 = vmul.f32 %v1549, %v1554
    %v1558 = vmul.f32 %v1550, %v1554
    %v1559 = vadd.f32 %v1535, %v1555
    %v1560 = vadd.f32 %v1536, %v1556
    %v1561 = vadd.f32 %v1537, %v1557
    %v1562 = vadd.f32 %v1538, %v1558
    %v1563 = vrot.slane %v1457, 1
    %v1564 = vrot.slane %v1461, 1
    %v1565 = vrot.slane %v1467, 1
    %v1566 = vrot.slane %v1471, 1
    %v1567 = vsel %vm545, %v1565, %v1566
    %v1568 = vsel %vm545, %v1564, %v1565
    %v1569 = vsel %vm545, %v1563, %v1564
    %v1570 = vsel %vm545, %v1566, %v1563
    %v1571 = vsel %vm554, %v1569, 0.0
    %v1572 = vsel %vm555, %v1568, 0.0
    %v1573 = vsel %vm556, %v1567, 0.0
    %v1574 = vsel %vm557, %v1570, 0.0
    %v1575 = vlaneseq
    %v1576 = vshrl.u32 %v1575, 7
    %v1577 = vsub.s32 4, %v1576
    %v1578 = vrot.slane %v1338, %v1577
    %v1579 = vmul.f32 %v1571, %v1578
    %v1580 = vmul.f32 %v1572, %v1578
    %v1581 = vmul.f32 %v1573, %v1578
    %v1582 = vmul.f32 %v1574, %v1578
    %v1583 = vadd.f32 %v1559, %v1579
    %v1584 = vadd.f32 %v1560, %v1580
    %v1585 = vadd.f32 %v1561, %v1581
    %v1586 = vadd.f32 %v1562, %v1582
    %v1587 = vrot.slane %v1457, 2
    %v1588 = vrot.slane %v1461, 2
    %v1589 = vrot.slane %v1467, 2
    %v1590 = vrot.slane %v1471, 2
    %v1591 = vsel %vm578, %v1589, %v1590
    %v1592 = vsel %vm578, %v1588, %v1589
    %v1593 = vsel %vm578, %v1587, %v1588
    %v1594 = vsel %vm578, %v1590, %v1587
    %v1595 = vsel %vm587, %v1593, 0.0
    %v1596 = vsel %vm588, %v1592, 0.0
    %v1597 = vsel %vm589, %v1591, 0.0
    %v1598 = vsel %vm590, %v1594, 0.0
    %v1599 = vlaneseq
    %v1600 = vshrl.u32 %v1599, 7
    %v1601 = vsub.s32 5, %v1600
    %v1602 = vrot.slane %v1338, %v1601
    %v1603 = vmul.f32 %v1595, %v1602
    %v1604 = vmul.f32 %v1596, %v1602
    %v1605 = vmul.f32 %v1597, %v1602
    %v1606 = vmul.f32 %v1598, %v1602
    %v1607 = vadd.f32 %v1583, %v1603
    %v1608 = vadd.f32 %v1584, %v1604
    %v1609 = vadd.f32 %v1585, %v1605
    %v1610 = vadd.f32 %v1586, %v1606
    %v1611 = vrot.slane %v1457, 3
    %v1612 = vrot.slane %v1461, 3
    %v1613 = vrot.slane %v1467, 3
    %v1614 = vrot.slane %v1471, 3
    %v1615 = vsel %vm611, %v1613, %v1614
    %v1616 = vsel %vm611, %v1612, %v1613
    %v1617 = vsel %vm611, %v1611, %v1612
    %v1618 = vsel %vm611, %v1614, %v1611
    %v1619 = vsel %vm620, %v1617, 0.0
    %v1620 = vsel %vm621, %v1616, 0.0
    %v1621 = vsel %vm622, %v1615, 0.0
    %v1622 = vsel %vm623, %v1618, 0.0
    %v1623 = vlaneseq
    %v1624 = vshrl.u32 %v1623, 7
    %v1625 = vsub.s32 6, %v1624
    %v1626 = vrot.slane %v1338, %v1625
    %v1627 = vmul.f32 %v1619, %v1626
    %v1628 = vmul.f32 %v1620, %v1626
    %v1629 = vmul.f32 %v1621, %v1626
    %v1630 = vmul.f32 %v1622, %v1626
    %v1631 = vadd.f32 %v1607, %v1627
    %v1632 = vadd.f32 %v1608, %v1628
    %v1633 = vadd.f32 %v1609, %v1629
    %v1634 = vadd.f32 %v1610, %v1630
    %v1635 = vmul.f32 %v1455, %v1631
    %v1636 = vmul.f32 %v1459, %v1632
    %v1637 = vmul.f32 %v1465, %v1633
    %v1638 = vmul.f32 %v1469, %v1634
    %v1639 = vpack.c.bf16 %v1636, %v1635
    %v1640 = vpack.c.bf16 %v1638, %v1637
    %v1642 = vlaneseq
    %v1643 = vshrl.u32 %v1642, 7
    %v1644 = vsub.s32 0, %v1643
    %v1645 = vrot.slane %v1347, %v1644
    %v1651 = vunpack.c.l.b16 %v1342
    %v1652 = vunpack.c.l.b16 %v1343
    %v1653 = vunpack.c.l.b16 %v1344
    %v1654 = vunpack.c.l.b16 %v1345
    %v1655 = vpack.c.b16 %v1652, %v1651
    %v1656 = vpack.c.b16 %v1654, %v1653
    %v1660 = vsel %vm226, %v1639, 0
    %v1663 = vsel %vm226, %v1640, 0
    %1665 = vmatprep.subr.bf16.mxu0 0
    %1666 = vmatpush1.bf16.msra.mxu0 0
    %1667 = vmatprep.subr.bf16.mxu0 0
    %1668 = vmatpush1.bf16.msra.mxu0 0
    %1669 = vmatprep.subr.bf16.mxu0 0
    %1670 = vmatpush1.bf16.msra.mxu0 0
    %1671 = vmatprep.subr.bf16.mxu0 0
    %1672 = vmatpush1.bf16.msra.mxu0 0
    %1673 = vmatprep.subr.bf16.mxu0 0
    %1674 = vmatpush1.bf16.msra.mxu0 0
    %1675 = vmatprep.subr.bf16.mxu0 0
    %1676 = vmatpush1.bf16.msra.mxu0 0
    %1677 = vmatprep.subr.bf16.mxu0 0
    %1678 = vmatpush1.bf16.msra.mxu0 %v1656
    %1679 = vmatprep.subr.bf16.mxu0 0
    %1680 = vmatpush1.bf16.msra.mxu0 %v1655
    %1681 = vmatprep.subr.bf16.mxu0 0
    %1682 = vmatpush2.bf16.msra.mxu0 0
    %1683 = vmatprep.subr.bf16.mxu0 0
    %1684 = vmatpush2.bf16.msra.mxu0 0
    %1685 = vmatprep.subr.bf16.mxu0 0
    %1686 = vmatpush2.bf16.msra.mxu0 0
    %1687 = vmatprep.subr.bf16.mxu0 0
    %1688 = vmatpush2.bf16.msra.mxu0 0
    %1689 = vmatprep.subr.bf16.mxu0 0
    %1690 = vmatpush2.bf16.msra.mxu0 0
    %1691 = vmatprep.subr.bf16.mxu0 0
    %1692 = vmatpush2.bf16.msra.mxu0 0
    %1693 = vmatprep.subr.bf16.mxu0 0
    %1694 = vmatpush2.bf16.msra.mxu0 0
    %1695 = vmatprep.subr.bf16.mxu0 0
    %1696 = vmatpush2.bf16.msra.mxu0 0
    %1697 = vmatprep.mubr.bf16.mxu0 0
    %1698 = vmatmul.mubr.bf16.gmra.mxu0 %v1660
    %v1699 = vpop.f32.mrf.mxu0
    %v1700 = vadd.f32 %v1645, %v1699
    %v1701 = vpop.f32.mrf.mxu0
    %v1702 = vpop.f32.mrf.mxu0
    %v1703 = vadd.f32 %v1645, %v1702
    %v1704 = vpop.f32.mrf.mxu0
    %1705 = vmatprep.mubr.bf16.mxu0 0
    %1706 = vmatmul.mubr.bf16.gmra.mxu0 %v1663
    %v1707 = vpop.f32.mrf.mxu0
    %v1708 = vadd.f32 %v1645, %v1707
    %v1709 = vpop.f32.mrf.mxu0
    %v1710 = vpop.f32.mrf.mxu0
    %v1711 = vadd.f32 %v1645, %v1710
    %v1712 = vpop.f32.mrf.mxu0
    %1713 = vdwg.mxu0
    %v1714 = vmul.f32 %v1700, %v1631
    %v1715 = vmul.f32 %v1703, %v1632
    %v1716 = vmul.f32 %v1708, %v1633
    %v1717 = vmul.f32 %v1711, %v1634
    %v1718 = vpack.c.bf16 %v1715, %v1714
    %v1719 = vpack.c.bf16 %v1717, %v1716
    %v1721 = vlaneseq
    %v1722 = vshrl.u32 %v1721, 7
    %v1723 = vsub.s32 0, %v1722
    %v1724 = vrot.slane %v1362, %v1723
    %v1738 = vunpack.c.l.b16 %v1349
    %v1739 = vunpack.c.l.b16 %v1350
    %v1740 = vunpack.c.l.b16 %v1351
    %v1741 = vunpack.c.l.b16 %v1352
    %v1742 = vunpack.c.l.b16 %v1353
    %v1743 = vunpack.c.l.b16 %v1354
    %v1744 = vunpack.c.l.b16 %v1355
    %v1745 = vunpack.c.l.b16 %v1356
    %v1746 = vunpack.c.l.b16 %v1357
    %v1747 = vunpack.c.l.b16 %v1358
    %v1748 = vunpack.c.l.b16 %v1359
    %v1749 = vunpack.c.l.b16 %v1360
    %v1750 = vpack.c.b16 %v1739, %v1738
    %v1751 = vpack.c.b16 %v1741, %v1740
    %v1752 = vpack.c.b16 %v1743, %v1742
    %v1753 = vpack.c.b16 %v1745, %v1744
    %v1754 = vpack.c.b16 %v1747, %v1746
    %v1755 = vpack.c.b16 %v1749, %v1748
    %v1763 = vsel %vm767, %v1718, 0
    %v1766 = vsel %vm767, %v1719, 0
    %1768 = vmatprep.subr.bf16.mxu0 0
    %1769 = vmatpush1.bf16.msra.mxu0 0
    %1770 = vmatprep.subr.bf16.mxu0 0
    %1771 = vmatpush1.bf16.msra.mxu0 0
    %1772 = vmatprep.subr.bf16.mxu0 0
    %1773 = vmatpush1.bf16.msra.mxu0 %v1755
    %1774 = vmatprep.subr.bf16.mxu0 0
    %1775 = vmatpush1.bf16.msra.mxu0 %v1754
    %1776 = vmatprep.subr.bf16.mxu0 0
    %1777 = vmatpush1.bf16.msra.mxu0 %v1753
    %1778 = vmatprep.subr.bf16.mxu0 0
    %1779 = vmatpush1.bf16.msra.mxu0 %v1752
    %1780 = vmatprep.subr.bf16.mxu0 0
    %1781 = vmatpush1.bf16.msra.mxu0 %v1751
    %1782 = vmatprep.subr.bf16.mxu0 0
    %1783 = vmatpush1.bf16.msra.mxu0 %v1750
    %1784 = vmatprep.subr.bf16.mxu0 0
    %1785 = vmatpush2.bf16.msra.mxu0 0
    %1786 = vmatprep.subr.bf16.mxu0 0
    %1787 = vmatpush2.bf16.msra.mxu0 0
    %1788 = vmatprep.subr.bf16.mxu0 0
    %1789 = vmatpush2.bf16.msra.mxu0 0
    %1790 = vmatprep.subr.bf16.mxu0 0
    %1791 = vmatpush2.bf16.msra.mxu0 0
    %1792 = vmatprep.subr.bf16.mxu0 0
    %1793 = vmatpush2.bf16.msra.mxu0 0
    %1794 = vmatprep.subr.bf16.mxu0 0
    %1795 = vmatpush2.bf16.msra.mxu0 0
    %1796 = vmatprep.subr.bf16.mxu0 0
    %1797 = vmatpush2.bf16.msra.mxu0 0
    %1798 = vmatprep.subr.bf16.mxu0 0
    %1799 = vmatpush2.bf16.msra.mxu0 0
    %1800 = vmatprep.mubr.bf16.mxu0 0
    %1801 = vmatmul.mubr.bf16.gmra.mxu0 %v1763
    %v1802 = vpop.f32.mrf.mxu0
    %v1803 = vadd.f32 %v1724, %v1802
    %v1804 = vpop.f32.mrf.mxu0
    %v1805 = vpop.f32.mrf.mxu0
    %v1806 = vadd.f32 %v1724, %v1805
    %v1807 = vpop.f32.mrf.mxu0
    %1808 = vmatprep.mubr.bf16.mxu0 0
    %1809 = vmatmul.mubr.bf16.gmra.mxu0 %v1766
    %v1810 = vpop.f32.mrf.mxu0
    %v1811 = vadd.f32 %v1724, %v1810
    %v1812 = vpop.f32.mrf.mxu0
    %v1813 = vpop.f32.mrf.mxu0
    %v1814 = vadd.f32 %v1724, %v1813
    %v1815 = vpop.f32.mrf.mxu0
    %1816 = vdwg.mxu0
    %v1817 = vmax.f32 %v1803, 0.0
    %v1818 = vmax.f32 %v1806, 0.0
    %v1819 = vmax.f32 %v1811, 0.0
    %v1820 = vmax.f32 %v1814, 0.0
    %v1821 = vpack.c.bf16 %v1818, %v1817
    %v1822 = vpack.c.bf16 %v1820, %v1819
    %v1823 = vunpack.c.l.bf16 %v1821
    %v1824 = vunpack.c.h.bf16 %v1821
    %v1825 = vunpack.c.l.bf16 %v1822
    %v1826 = vunpack.c.h.bf16 %v1822
    %v1827 = vld [vmem:[%s10] sm:$0x1]
    %v1829 = vlaneseq
    %v1830 = vshrl.u32 %v1829, 7
    %v1831 = vsub.s32 0, %v1830
    %v1832 = vrot.slane %v1827, %v1831
    %v1834 = vmul.f32 %v1823, %v1832
    %v1835 = vmul.f32 %v1824, %v1832
    %v1836 = vmul.f32 %v1825, %v1832
    %v1837 = vmul.f32 %v1826, %v1832
    %v1838 = vld [vmem:[%s11] sm:$0x1]
    %v1840 = vlaneseq
    %v1841 = vshrl.u32 %v1840, 7
    %v1842 = vsub.s32 0, %v1841
    %v1843 = vrot.slane %v1838, %v1842
    %v1845 = vadd.f32 %v1834, %v1843
    %v1846 = vadd.f32 %v1835, %v1843
    %v1847 = vadd.f32 %v1836, %v1843
    %v1848 = vadd.f32 %v1837, %v1843
    %1849 = vst.msk [vmem:[#allocation5] sm:$0xff] %vm364, %v1845
    %1850 = vst.msk [vmem:[#allocation5 + $0x8] sm:$0xff] %vm364, %v1846
    %1851 = vst.msk [vmem:[#allocation5 + $0x10] sm:$0xff] %vm364, %v1847
    %1852 = vst.msk [vmem:[#allocation5 + $0x18] sm:$0xff] %vm364, %v1848
    // Predicated region
    $region54: #{tpu_custom_call.1} parent=1 // pred_check
      _
    $region55: #{tpu_custom_call.1} parent=1 // pred_check_branch
      %1854 = sbr.rel (0) target = $region57
    $region56: #{tpu_custom_call.1} parent=1 // pred_region
      %s1856 = ssub.s32 512, 512
      %1857 = vsyncadd [#allocation4], %s1856
      %s1858 = sshll.u32 [#allocation5], 4
      %s1859 = int_to_ptr.vmem [resolvable:$true] %s1858
      %1864 = dma.vmem_to_hbm [thread:$0]  %s1859, 512, %s12, [#allocation4], 128, 128, 8
    $region57: #{tpu_custom_call.1} parent=1 // pred_fallthru
      _
    // Predicated region
    $region58: #{tpu_custom_call.1} parent=1 // pred_check
      _
    $region59: #{tpu_custom_call.1} parent=1 // pred_check_branch
      %1866 = sbr.rel (0) target = $region61
    $region60: #{tpu_custom_call.1} parent=1 // pred_region
      %1867 = dma.done [#allocation4], 512
    $region61: #{tpu_custom_call.1} parent=1 // pred_fallthru
      _
    %1868 = vsyncpa [#allocation3], 1
    %1869 = vsyncpa [#allocation4], 1

</llo_original>
